<compile_context>
chip_gen: v7x
topology: tpu7x:2x2x1
jax: 0.10.0
libtpu: 0.0.40
codegen_flags: <defaults>
</compile_context>

<pallas_src>
import jax
import jax.numpy as jnp
from jax.experimental import pallas as pl
from jax.experimental.pallas import tpu as pltpu


def _conv_tile(x0_ref, x1_ref, x2_ref, w_ref):
    """3x3 'same' conv of one row band as 9 accumulated matmuls.

    x{k}_ref : (1, TH, W+2, C_in) band of the padded input, row-shifted by k.
    w_ref    : (3, 3, C_in, C_out) weights.
    Returns f32 (TH*W, C_out).
    """
    bands = (x0_ref[0], x1_ref[0], x2_ref[0])          # each (TH, W+2, C_in)
    th, wp2, c_in = bands[0].shape
    w_cols = wp2 - 2
    c_out = w_ref.shape[-1]
    acc = jnp.zeros((th * w_cols, c_out), jnp.float32)
    for kh in range(3):
        band = bands[kh]
        for kw in range(3):
            lhs = band[:, kw:kw + w_cols, :].reshape(th * w_cols, c_in)
            acc += jnp.dot(lhs, w_ref[kh, kw],
                           preferred_element_type=jnp.float32)
    return acc


def _stats_kernel(x0_ref, x1_ref, x2_ref, w_ref, sum_ref, sumsq_ref):
    # Per-channel sum / sum-of-squares of the conv output, accumulated across
    # the whole grid (outputs are resident: constant block index, arbitrary axes).
    @pl.when((pl.program_id(0) == 0) & (pl.program_id(1) == 0))
    def _():
        sum_ref[...] = jnp.zeros_like(sum_ref)
        sumsq_ref[...] = jnp.zeros_like(sumsq_ref)

    y = _conv_tile(x0_ref, x1_ref, x2_ref, w_ref)
    sum_ref[...] += jnp.sum(y, axis=0, keepdims=True)
    sumsq_ref[...] += jnp.sum(y * y, axis=0, keepdims=True)


def _apply_kernel(x0_ref, x1_ref, x2_ref, w_ref, shift_ref, out_ref):
    # BN scale is pre-folded into w_ref, so the epilogue is a single f32 add.
    y = _conv_tile(x0_ref, x1_ref, x2_ref, w_ref)
    out_ref[...] = (y + shift_ref[...]).astype(out_ref.dtype)


def _pick_tile_h(H, W, itemsize):
    # Keep the (tile_h*W, C_out) output slab modest so double-buffered blocks fit
    # v7x's 64 MiB VMEM: ~1024 rows in f32, ~2048 in bf16. v5e/v6e can go larger.
    target_rows = 2048 if itemsize <= 2 else 1024
    th = max(1, min(H, max(1, target_rows // max(W, 1))))
    while H % th:
        th -= 1
    return th


def stem_forward(x_nchw, w_oihw, gamma, beta, *, eps=1e-5,
                 compute_dtype=None, tile_h=None):
    N, C_in, H, W = x_nchw.shape
    C_out = w_oihw.shape[0]
    compute_dtype = compute_dtype or x_nchw.dtype
    itemsize = jnp.dtype(compute_dtype).itemsize
    tile_h = tile_h or _pick_tile_h(H, W, itemsize)
    assert H % tile_h == 0, "tile_h must divide H"
    n_ht = H // tile_h
    R = N * H * W

    # --- glue (plain JAX): layout + zero pad + three row-shifted views --------
    x = jnp.transpose(x_nchw, (0, 2, 3, 1)).astype(compute_dtype)      # NHWC
    xp = jnp.pad(x, ((0, 0), (1, 1), (1, 1), (0, 0)))                  # pad=1
    x_shift = [xp[:, s:s + H] for s in range(3)]                       # (N,H,W+2,Cin)
    # PyTorch (C_out, C_in, 3, 3) -> (kh, kw, C_in, C_out), kept in f32 here.
    w_t = jnp.transpose(w_oihw, (2, 3, 1, 0)).astype(jnp.float32)

    grid = (N, n_ht)
    x_spec = pl.BlockSpec((1, tile_h, W + 2, C_in), lambda n, i: (n, i, 0, 0))
    w_spec = pl.BlockSpec((3, 3, C_in, C_out), lambda n, i: (0, 0, 0, 0))
    vec_spec = pl.BlockSpec((1, C_out), lambda n, i: (0, 0))
    vmem_limit = 32 * 1024 * 1024   # within every generation's budget

    # --- pass 1: batch statistics of the conv output --------------------------
    s1, s2 = pl.pallas_call(
        _stats_kernel,
        grid=grid,
        in_specs=[x_spec, x_spec, x_spec, w_spec],
        out_specs=[vec_spec, vec_spec],
        out_shape=[jax.ShapeDtypeStruct((1, C_out), jnp.float32),
                   jax.ShapeDtypeStruct((1, C_out), jnp.float32)],
        compiler_params=pltpu.CompilerParams(
            dimension_semantics=("arbitrary", "arbitrary"),
            vmem_limit_bytes=vmem_limit),
    )(*x_shift, w_t.astype(compute_dtype))

    # --- fold BN into the conv: y*scale + shift == x (*) (w*scale) + shift ----
    mean = s1[0] / R
    var = jnp.maximum(s2[0] / R - mean * mean, 0.0)
    scale = gamma.astype(jnp.float32) * jax.lax.rsqrt(var + eps)
    shift = (beta.astype(jnp.float32) - mean * scale).reshape(1, C_out)
    w_scaled = (w_t * scale[None, None, None, :]).astype(compute_dtype)

    # --- pass 2: conv with folded scale, add shift, write output --------------
    out_spec = pl.BlockSpec((tile_h * W, C_out), lambda n, i: (n * n_ht + i, 0))
    out = pl.pallas_call(
        _apply_kernel,
        grid=grid,
        in_specs=[x_spec, x_spec, x_spec, w_spec, vec_spec],
        out_specs=out_spec,
        out_shape=jax.ShapeDtypeStruct((R, C_out), x_nchw.dtype),
        compiler_params=pltpu.CompilerParams(
            dimension_semantics=("parallel", "parallel"),
            vmem_limit_bytes=vmem_limit),
    )(*x_shift, w_scaled, shift)

    out = out.reshape(N, H, W, C_out)
    return jnp.transpose(out, (0, 3, 1, 2))                            # NCHW


def stem_reference(x_nchw, w_oihw, gamma, beta, eps=1e-5):
    """Pure-JAX f32 reference (conv + training-mode BN) for validation."""
    y = jax.lax.conv_general_dilated(
        x_nchw, w_oihw, window_strides=(1, 1), padding=((1, 1), (1, 1)),
        dimension_numbers=("NCHW", "OIHW", "NCHW"))
    mean = jnp.mean(y, axis=(0, 2, 3), keepdims=True)
    var = jnp.mean((y - mean) ** 2, axis=(0, 2, 3), keepdims=True)
    return (y - mean) * jax.lax.rsqrt(var + eps) * gamma.reshape(1, -1, 1, 1) \
        + beta.reshape(1, -1, 1, 1)


if __name__ == "__main__":
    # Small shapes consistent with Stem(C_in=4, C_out=64) on a 16x16 image.
    N, C_in, H, W, C_out = 2, 4, 16, 16, 64

    key = jax.random.PRNGKey(0)
    kx, kw, kg, kb = jax.random.split(key, 4)
    x = jax.random.normal(kx, (N, C_in, H, W), dtype=jnp.float32)
    fan_in = C_in * 9
    w = jax.random.normal(kw, (C_out, C_in, 3, 3), dtype=jnp.float32) * (2.0 / fan_in) ** 0.5
    gamma = 1.0 + 0.1 * jax.random.normal(kg, (C_out,), dtype=jnp.float32)
    beta = 0.1 * jax.random.normal(kb, (C_out,), dtype=jnp.float32)

    ref = stem_reference(x, w, gamma, beta)

    # f32 path (exact module semantics); tile_h=8 exercises a 2x2 grid.
    out = stem_forward(x, w, gamma, beta, tile_h=8)
    out = jax.block_until_ready(out)
    assert out.shape == (N, C_out, H, W)
    assert jnp.allclose(out, ref, atol=1e-3, rtol=1e-3), "f32 mismatch vs reference"

    # bf16 compute path (f32 accumulation / BN math); looser tolerance covers
    # the bf16 input quantization of the conv.
    out_bf16 = stem_forward(x, w, gamma, beta, compute_dtype=jnp.bfloat16, tile_h=8)
    out_bf16 = jax.block_until_ready(out_bf16)
    assert jnp.allclose(out_bf16, ref, atol=3e-2, rtol=3e-2), "bf16 mismatch vs reference"

    print("KERNEL_OK")
</pallas_src>

<mosaic_0001>
module attributes {stable_mosaic.version = 11 : i64} {
  func.func @_stats_kernel(%arg0: i32, %arg1: i32, %arg2: memref<1x8x18x4xf32, #tpu.memory_space<vmem>>, %arg3: memref<1x8x18x4xf32, #tpu.memory_space<vmem>>, %arg4: memref<1x8x18x4xf32, #tpu.memory_space<vmem>>, %arg5: memref<3x3x4x64xf32, #tpu.memory_space<vmem>>, %arg6: memref<1x64xf32, #tpu.memory_space<vmem>>, %arg7: memref<1x64xf32, #tpu.memory_space<vmem>>) attributes {dimension_semantics = [#tpu.dimension_semantics<arbitrary>, #tpu.dimension_semantics<arbitrary>], iteration_bounds = array<i64: 2, 2>, scalar_prefetch = 0 : i64, scratch_operands = 0 : i64, tpu.core_type = #tpu.core_type<tc>, window_params = [{transform_indices = @transform_0, window_bounds = array<i64: 1, 8, 18, 4>}, {transform_indices = @transform_1, window_bounds = array<i64: 1, 8, 18, 4>}, {transform_indices = @transform_2, window_bounds = array<i64: 1, 8, 18, 4>}, {pipeline_mode = #tpu.pipeline_mode<synchronous>, transform_indices = @transform_3, window_bounds = array<i64: 3, 3, 4, 64>}, {pipeline_mode = #tpu.pipeline_mode<synchronous>, transform_indices = @transform_4, window_bounds = array<i64: 1, 64>}, {pipeline_mode = #tpu.pipeline_mode<synchronous>, transform_indices = @transform_5, window_bounds = array<i64: 1, 64>}]} {
    %c0_i32 = arith.constant 0 : i32
    %0 = arith.cmpi eq, %arg0, %c0_i32 : i32
    %c0_i32_0 = arith.constant 0 : i32
    %1 = arith.cmpi eq, %arg1, %c0_i32_0 : i32
    %2 = arith.andi %0, %1 : i1
    %3 = arith.extui %2 : i1 to i32
    %c0_i32_1 = arith.constant 0 : i32
    %4 = arith.cmpi ne, %3, %c0_i32_1 : i32
    scf.if %4 {
      %cst_66 = arith.constant 0.000000e+00 : f32
      %77 = vector.broadcast %cst_66 : f32 to vector<1x64xf32>
      %c0_67 = arith.constant 0 : index
      %c0_68 = arith.constant 0 : index
      %78 = vector.load %arg6[%c0_67, %c0_68] : memref<1x64xf32, #tpu.memory_space<vmem>>, vector<1x64xf32>
      tpu.vector_store %arg6[%c0_67, %c0_68], %77 {strides = array<i32>} : memref<1x64xf32, #tpu.memory_space<vmem>>, vector<1x64xf32>,
      %cst_69 = arith.constant 0.000000e+00 : f32
      %79 = vector.broadcast %cst_69 : f32 to vector<1x64xf32>
      %c0_70 = arith.constant 0 : index
      %c0_71 = arith.constant 0 : index
      %80 = vector.load %arg7[%c0_70, %c0_71] : memref<1x64xf32, #tpu.memory_space<vmem>>, vector<1x64xf32>
      tpu.vector_store %arg7[%c0_70, %c0_71], %79 {strides = array<i32>} : memref<1x64xf32, #tpu.memory_space<vmem>>, vector<1x64xf32>,
    } else {
    }
    %c0 = arith.constant 0 : index
    %c0_2 = arith.constant 0 : index
    %c0_3 = arith.constant 0 : index
    %c0_4 = arith.constant 0 : index
    %5 = vector.load %arg2[%c0, %c0_2, %c0_3, %c0_4] : memref<1x8x18x4xf32, #tpu.memory_space<vmem>>, vector<1x8x18x4xf32>
    %6 = vector.shape_cast %5 : vector<1x8x18x4xf32> to vector<8x18x4xf32>
    %c0_5 = arith.constant 0 : index
    %c0_6 = arith.constant 0 : index
    %c0_7 = arith.constant 0 : index
    %c0_8 = arith.constant 0 : index
    %7 = vector.load %arg3[%c0_5, %c0_6, %c0_7, %c0_8] : memref<1x8x18x4xf32, #tpu.memory_space<vmem>>, vector<1x8x18x4xf32>
    %8 = vector.shape_cast %7 : vector<1x8x18x4xf32> to vector<8x18x4xf32>
    %c0_9 = arith.constant 0 : index
    %c0_10 = arith.constant 0 : index
    %c0_11 = arith.constant 0 : index
    %c0_12 = arith.constant 0 : index
    %9 = vector.load %arg4[%c0_9, %c0_10, %c0_11, %c0_12] : memref<1x8x18x4xf32, #tpu.memory_space<vmem>>, vector<1x8x18x4xf32>
    %10 = vector.shape_cast %9 : vector<1x8x18x4xf32> to vector<8x18x4xf32>
    %cst = arith.constant 0.000000e+00 : f32
    %11 = vector.broadcast %cst : f32 to vector<128x64xf32>
    %12 = vector.extract_strided_slice %6 {offsets = [0, 0, 0], sizes = [8, 16, 4], strides = [1, 1, 1]} : vector<8x18x4xf32> to vector<8x16x4xf32>
    %13 = vector.shape_cast %12 : vector<8x16x4xf32> to vector<128x4xf32>
    %c0_13 = arith.constant 0 : index
    %c0_14 = arith.constant 0 : index
    %c0_15 = arith.constant 0 : index
    %c0_16 = arith.constant 0 : index
    %14 = vector.load %arg5[%c0_13, %c0_14, %c0_15, %c0_16] : memref<3x3x4x64xf32, #tpu.memory_space<vmem>>, vector<1x1x4x64xf32>
    %15 = vector.shape_cast %14 : vector<1x1x4x64xf32> to vector<4x64xf32>
    %cst_17 = arith.constant dense<0.000000e+00> : vector<128x64xf32>
    %16 = tpu.matmul %13, %15, %cst_17 {dimension_numbers = #tpu.dot_dimension_numbers<[1], [0], [0], [1], [0, 0, 1, 1], [], []>} : vector<128x4xf32>, vector<4x64xf32>, vector<128x64xf32> -> vector<128x64xf32>
    %17 = arith.addf %11, %16 : vector<128x64xf32>
    %18 = vector.extract_strided_slice %6 {offsets = [0, 1, 0], sizes = [8, 16, 4], strides = [1, 1, 1]} : vector<8x18x4xf32> to vector<8x16x4xf32>
    %19 = vector.shape_cast %18 : vector<8x16x4xf32> to vector<128x4xf32>
    %c0_18 = arith.constant 0 : index
    %c1 = arith.constant 1 : index
    %c0_19 = arith.constant 0 : index
    %c0_20 = arith.constant 0 : index
    %20 = vector.load %arg5[%c0_18, %c1, %c0_19, %c0_20] : memref<3x3x4x64xf32, #tpu.memory_space<vmem>>, vector<1x1x4x64xf32>
    %21 = vector.shape_cast %20 : vector<1x1x4x64xf32> to vector<4x64xf32>
    %cst_21 = arith.constant dense<0.000000e+00> : vector<128x64xf32>
    %22 = tpu.matmul %19, %21, %cst_21 {dimension_numbers = #tpu.dot_dimension_numbers<[1], [0], [0], [1], [0, 0, 1, 1], [], []>} : vector<128x4xf32>, vector<4x64xf32>, vector<128x64xf32> -> vector<128x64xf32>
    %23 = arith.addf %17, %22 : vector<128x64xf32>
    %24 = vector.extract_strided_slice %6 {offsets = [0, 2, 0], sizes = [8, 16, 4], strides = [1, 1, 1]} : vector<8x18x4xf32> to vector<8x16x4xf32>
    %25 = vector.shape_cast %24 : vector<8x16x4xf32> to vector<128x4xf32>
    %c0_22 = arith.constant 0 : index
    %c2 = arith.constant 2 : index
    %c0_23 = arith.constant 0 : index
    %c0_24 = arith.constant 0 : index
    %26 = vector.load %arg5[%c0_22, %c2, %c0_23, %c0_24] : memref<3x3x4x64xf32, #tpu.memory_space<vmem>>, vector<1x1x4x64xf32>
    %27 = vector.shape_cast %26 : vector<1x1x4x64xf32> to vector<4x64xf32>
    %cst_25 = arith.constant dense<0.000000e+00> : vector<128x64xf32>
    %28 = tpu.matmul %25, %27, %cst_25 {dimension_numbers = #tpu.dot_dimension_numbers<[1], [0], [0], [1], [0, 0, 1, 1], [], []>} : vector<128x4xf32>, vector<4x64xf32>, vector<128x64xf32> -> vector<128x64xf32>
    %29 = arith.addf %23, %28 : vector<128x64xf32>
    %30 = vector.extract_strided_slice %8 {offsets = [0, 0, 0], sizes = [8, 16, 4], strides = [1, 1, 1]} : vector<8x18x4xf32> to vector<8x16x4xf32>
    %31 = vector.shape_cast %30 : vector<8x16x4xf32> to vector<128x4xf32>
    %c1_26 = arith.constant 1 : index
    %c0_27 = arith.constant 0 : index
    %c0_28 = arith.constant 0 : index
    %c0_29 = arith.constant 0 : index
    %32 = vector.load %arg5[%c1_26, %c0_27, %c0_28, %c0_29] : memref<3x3x4x64xf32, #tpu.memory_space<vmem>>, vector<1x1x4x64xf32>
    %33 = vector.shape_cast %32 : vector<1x1x4x64xf32> to vector<4x64xf32>
    %cst_30 = arith.constant dense<0.000000e+00> : vector<128x64xf32>
    %34 = tpu.matmul %31, %33, %cst_30 {dimension_numbers = #tpu.dot_dimension_numbers<[1], [0], [0], [1], [0, 0, 1, 1], [], []>} : vector<128x4xf32>, vector<4x64xf32>, vector<128x64xf32> -> vector<128x64xf32>
    %35 = arith.addf %29, %34 : vector<128x64xf32>
    %36 = vector.extract_strided_slice %8 {offsets = [0, 1, 0], sizes = [8, 16, 4], strides = [1, 1, 1]} : vector<8x18x4xf32> to vector<8x16x4xf32>
    %37 = vector.shape_cast %36 : vector<8x16x4xf32> to vector<128x4xf32>
    %c1_31 = arith.constant 1 : index
    %c1_32 = arith.constant 1 : index
    %c0_33 = arith.constant 0 : index
    %c0_34 = arith.constant 0 : index
    %38 = vector.load %arg5[%c1_31, %c1_32, %c0_33, %c0_34] : memref<3x3x4x64xf32, #tpu.memory_space<vmem>>, vector<1x1x4x64xf32>
    %39 = vector.shape_cast %38 : vector<1x1x4x64xf32> to vector<4x64xf32>
    %cst_35 = arith.constant dense<0.000000e+00> : vector<128x64xf32>
    %40 = tpu.matmul %37, %39, %cst_35 {dimension_numbers = #tpu.dot_dimension_numbers<[1], [0], [0], [1], [0, 0, 1, 1], [], []>} : vector<128x4xf32>, vector<4x64xf32>, vector<128x64xf32> -> vector<128x64xf32>
    %41 = arith.addf %35, %40 : vector<128x64xf32>
    %42 = vector.extract_strided_slice %8 {offsets = [0, 2, 0], sizes = [8, 16, 4], strides = [1, 1, 1]} : vector<8x18x4xf32> to vector<8x16x4xf32>
    %43 = vector.shape_cast %42 : vector<8x16x4xf32> to vector<128x4xf32>
    %c1_36 = arith.constant 1 : index
    %c2_37 = arith.constant 2 : index
    %c0_38 = arith.constant 0 : index
    %c0_39 = arith.constant 0 : index
    %44 = vector.load %arg5[%c1_36, %c2_37, %c0_38, %c0_39] : memref<3x3x4x64xf32, #tpu.memory_space<vmem>>, vector<1x1x4x64xf32>
    %45 = vector.shape_cast %44 : vector<1x1x4x64xf32> to vector<4x64xf32>
    %cst_40 = arith.constant dense<0.000000e+00> : vector<128x64xf32>
    %46 = tpu.matmul %43, %45, %cst_40 {dimension_numbers = #tpu.dot_dimension_numbers<[1], [0], [0], [1], [0, 0, 1, 1], [], []>} : vector<128x4xf32>, vector<4x64xf32>, vector<128x64xf32> -> vector<128x64xf32>
    %47 = arith.addf %41, %46 : vector<128x64xf32>
    %48 = vector.extract_strided_slice %10 {offsets = [0, 0, 0], sizes = [8, 16, 4], strides = [1, 1, 1]} : vector<8x18x4xf32> to vector<8x16x4xf32>
    %49 = vector.shape_cast %48 : vector<8x16x4xf32> to vector<128x4xf32>
    %c2_41 = arith.constant 2 : index
    %c0_42 = arith.constant 0 : index
    %c0_43 = arith.constant 0 : index
    %c0_44 = arith.constant 0 : index
    %50 = vector.load %arg5[%c2_41, %c0_42, %c0_43, %c0_44] : memref<3x3x4x64xf32, #tpu.memory_space<vmem>>, vector<1x1x4x64xf32>
    %51 = vector.shape_cast %50 : vector<1x1x4x64xf32> to vector<4x64xf32>
    %cst_45 = arith.constant dense<0.000000e+00> : vector<128x64xf32>
    %52 = tpu.matmul %49, %51, %cst_45 {dimension_numbers = #tpu.dot_dimension_numbers<[1], [0], [0], [1], [0, 0, 1, 1], [], []>} : vector<128x4xf32>, vector<4x64xf32>, vector<128x64xf32> -> vector<128x64xf32>
    %53 = arith.addf %47, %52 : vector<128x64xf32>
    %54 = vector.extract_strided_slice %10 {offsets = [0, 1, 0], sizes = [8, 16, 4], strides = [1, 1, 1]} : vector<8x18x4xf32> to vector<8x16x4xf32>
    %55 = vector.shape_cast %54 : vector<8x16x4xf32> to vector<128x4xf32>
    %c2_46 = arith.constant 2 : index
    %c1_47 = arith.constant 1 : index
    %c0_48 = arith.constant 0 : index
    %c0_49 = arith.constant 0 : index
    %56 = vector.load %arg5[%c2_46, %c1_47, %c0_48, %c0_49] : memref<3x3x4x64xf32, #tpu.memory_space<vmem>>, vector<1x1x4x64xf32>
    %57 = vector.shape_cast %56 : vector<1x1x4x64xf32> to vector<4x64xf32>
    %cst_50 = arith.constant dense<0.000000e+00> : vector<128x64xf32>
    %58 = tpu.matmul %55, %57, %cst_50 {dimension_numbers = #tpu.dot_dimension_numbers<[1], [0], [0], [1], [0, 0, 1, 1], [], []>} : vector<128x4xf32>, vector<4x64xf32>, vector<128x64xf32> -> vector<128x64xf32>
    %59 = arith.addf %53, %58 : vector<128x64xf32>
    %60 = vector.extract_strided_slice %10 {offsets = [0, 2, 0], sizes = [8, 16, 4], strides = [1, 1, 1]} : vector<8x18x4xf32> to vector<8x16x4xf32>
    %61 = vector.shape_cast %60 : vector<8x16x4xf32> to vector<128x4xf32>
    %c2_51 = arith.constant 2 : index
    %c2_52 = arith.constant 2 : index
    %c0_53 = arith.constant 0 : index
    %c0_54 = arith.constant 0 : index
    %62 = vector.load %arg5[%c2_51, %c2_52, %c0_53, %c0_54] : memref<3x3x4x64xf32, #tpu.memory_space<vmem>>, vector<1x1x4x64xf32>
    %63 = vector.shape_cast %62 : vector<1x1x4x64xf32> to vector<4x64xf32>
    %cst_55 = arith.constant dense<0.000000e+00> : vector<128x64xf32>
    %64 = tpu.matmul %61, %63, %cst_55 {dimension_numbers = #tpu.dot_dimension_numbers<[1], [0], [0], [1], [0, 0, 1, 1], [], []>} : vector<128x4xf32>, vector<4x64xf32>, vector<128x64xf32> -> vector<128x64xf32>
    %65 = arith.addf %59, %64 : vector<128x64xf32>
    %c0_56 = arith.constant 0 : index
    %c0_57 = arith.constant 0 : index
    %66 = vector.load %arg6[%c0_56, %c0_57] : memref<1x64xf32, #tpu.memory_space<vmem>>, vector<1x64xf32>
    %cst_58 = arith.constant dense<0.000000e+00> : vector<64xf32>
    %67 = vector.multi_reduction <add>, %65, %cst_58 [0] : vector<128x64xf32> to vector<64xf32>
    %68 = vector.shape_cast %67 : vector<64xf32> to vector<1x64xf32>
    %69 = arith.addf %66, %68 : vector<1x64xf32>
    %c0_59 = arith.constant 0 : index
    %c0_60 = arith.constant 0 : index
    %70 = vector.load %arg6[%c0_59, %c0_60] : memref<1x64xf32, #tpu.memory_space<vmem>>, vector<1x64xf32>
    tpu.vector_store %arg6[%c0_59, %c0_60], %69 {strides = array<i32>} : memref<1x64xf32, #tpu.memory_space<vmem>>, vector<1x64xf32>,
    %c0_61 = arith.constant 0 : index
    %c0_62 = arith.constant 0 : index
    %71 = vector.load %arg7[%c0_61, %c0_62] : memref<1x64xf32, #tpu.memory_space<vmem>>, vector<1x64xf32>
    %72 = arith.mulf %65, %65 : vector<128x64xf32>
    %cst_63 = arith.constant dense<0.000000e+00> : vector<64xf32>
    %73 = vector.multi_reduction <add>, %72, %cst_63 [0] : vector<128x64xf32> to vector<64xf32>
    %74 = vector.shape_cast %73 : vector<64xf32> to vector<1x64xf32>
    %75 = arith.addf %71, %74 : vector<1x64xf32>
    %c0_64 = arith.constant 0 : index
    %c0_65 = arith.constant 0 : index
    %76 = vector.load %arg7[%c0_64, %c0_65] : memref<1x64xf32, #tpu.memory_space<vmem>>, vector<1x64xf32>
    tpu.vector_store %arg7[%c0_64, %c0_65], %75 {strides = array<i32>} : memref<1x64xf32, #tpu.memory_space<vmem>>, vector<1x64xf32>,
    return
  }
  func.func @transform_0(%arg0: i32, %arg1: i32) -> (i32, i32, i32, i32) {
    %c0_i32 = arith.constant 0 : i32
    %c0_i32_0 = arith.constant 0 : i32
    %c0_i32_1 = arith.constant 0 : i32
    return %arg0, %arg1, %c0_i32, %c0_i32_0 : i32, i32, i32, i32
  }
  func.func @transform_1(%arg0: i32, %arg1: i32) -> (i32, i32, i32, i32) {
    %c0_i32 = arith.constant 0 : i32
    %c0_i32_0 = arith.constant 0 : i32
    %c0_i32_1 = arith.constant 0 : i32
    return %arg0, %arg1, %c0_i32, %c0_i32_0 : i32, i32, i32, i32
  }
  func.func @transform_2(%arg0: i32, %arg1: i32) -> (i32, i32, i32, i32) {
    %c0_i32 = arith.constant 0 : i32
    %c0_i32_0 = arith.constant 0 : i32
    %c0_i32_1 = arith.constant 0 : i32
    return %arg0, %arg1, %c0_i32, %c0_i32_0 : i32, i32, i32, i32
  }
  func.func @transform_3(%arg0: i32, %arg1: i32) -> (i32, i32, i32, i32) {
    %c0_i32 = arith.constant 0 : i32
    %c0_i32_0 = arith.constant 0 : i32
    %c0_i32_1 = arith.constant 0 : i32
    %c0_i32_2 = arith.constant 0 : i32
    %c0_i32_3 = arith.constant 0 : i32
    return %c0_i32, %c0_i32_0, %c0_i32_1, %c0_i32_2 : i32, i32, i32, i32
  }
  func.func @transform_4(%arg0: i32, %arg1: i32) -> (i32, i32) {
    %c0_i32 = arith.constant 0 : i32
    %c0_i32_0 = arith.constant 0 : i32
    %c0_i32_1 = arith.constant 0 : i32
    return %c0_i32, %c0_i32_0 : i32, i32
  }
  func.func @transform_5(%arg0: i32, %arg1: i32) -> (i32, i32) {
    %c0_i32 = arith.constant 0 : i32
    %c0_i32_0 = arith.constant 0 : i32
    %c0_i32_1 = arith.constant 0 : i32
    return %c0_i32, %c0_i32_0 : i32, i32
  }
}

</mosaic_0001>

<llo_original>
// kernel: tpu_custom_call.1
$region0: #{tpu_custom_call.1}
  #allocation0 [shape = 'u32[]', space=smem, size = 0x4, offset = 0x4, fixed_abs, tag = 'smem constant byte address 0x4 - core index']
  #allocation1 [shape = 'u32[144,128]{1,0:T(1,128)}', space=vmem, size = 0x12000, scoped, tag = 'internal scratch']
  %s0 = inlined_call_operand.vmem [shape: f32[2,16,18,4], index: 0, kind: input, shape index: {}]
  %s1 = inlined_call_operand.vmem [shape: f32[2,16,18,4], index: 1, kind: input, shape index: {}]
  %s2 = inlined_call_operand.vmem [shape: f32[2,16,18,4], index: 2, kind: input, shape index: {}]
  %s3 = inlined_call_operand.vmem [shape: f32[3,3,4,64], index: 3, kind: input, shape index: {}]
  %s4 = inlined_call_operand.hbm [shape: f32[1,64], index: 4, kind: output, shape index: {0}]
  %s5 = inlined_call_operand.hbm [shape: f32[1,64], index: 5, kind: output, shape index: {1}]
  %6 = xla_tuple %s4, %s5
  %s7 = sld [smem:[#allocation0]]
  $region61: #{tpu_custom_call.1} parent=0
    _
  %s9 = ssub.s32 1, %s7
  %s10 = scalar_select 0, %s9, %s7
  $region1: #{tpu_custom_call.1} parent=0
    #allocation2 [shape = 'u8[512]{0}', space=vmem, size = 0x400, scoped, tag = 'output window, operand 0, single buffered']
    #allocation3 [shape = 's32[2]{0}', space=sflag, size = 0x8, scoped, tag = 'scoped memory for tpu_custom_call.1']
    #allocation4 [shape = 'u8[512]{0}', space=vmem, size = 0x400, scoped, tag = 'output window, operand 1, single buffered']
    #allocation5 [shape = 's32[1]{0}', space=sflag, size = 0x4, scoped, tag = 'scoped memory for tpu_custom_call.1']
    %11 = vsyncpa [#allocation3], 0
    %12 = vsyncpa [#allocation5], 0
    loop: start=0, step=1, limit=6
    $region2: #{tpu_custom_call.1} parent=1 // loop_pre_header
      _
    $region3: #{tpu_custom_call.1} parent=1 // loop_header
      %s14 = sphi 0, %s18
      %p15 = scmp.ge.s32.totalorder %s14, 6
      %s21 = sphi 0, %s33
      %s22 = sphi 0, %s29
      %s23 = sphi 0, %s21
      %s24 = sphi 0, %s22
      %s25 = sphi 0, %s23
      %s26 = sphi 0, %s24
      %s38 = sphi 0, %s40
      %s41 = sphi 0, %s38
      %s42 = sphi 0, %s41
      %s58 = sphi 0, %s42
      %s66 = sphi 0, %s68
      %s69 = sphi 0, %s66
      %s70 = sphi 0, %s69
      %s86 = sphi 0, %s70
      %s94 = sphi 0, %s96
      %s97 = sphi 0, %s94
      %s98 = sphi 0, %s97
      %s114 = sphi 0, %s98
      %s118 = sphi 0, %s118
      %s120 = sphi 0, %s118
      %s121 = sphi 0, %s120
      %s135 = sphi 0, %s121
      %s139 = sphi 0, %s139
      %s141 = sphi 0, %s139
      %s142 = sphi 0, %s141
      %s156 = sphi 0, %s142
      %s160 = sphi 0, %s160
      %s162 = sphi 0, %s160
      %s163 = sphi 0, %s162
      %s177 = sphi 0, %s163
    $region4: #{tpu_custom_call.1} parent=1 // loop_header_branch
      %17 = sbr.rel (%p15) target = $region8
    $region5: #{tpu_custom_call.1} parent=1 // loop_body
      %s19 = ssub.s32 %s14, 1
      %s20 = ssub.s32 %s14, 2
      %s27 = sadd.s32 1, %s22
      %p28 = scmp.ge.s32.totalorder %s27, 2
      %s29 = scalar_select %p28, 0, %s27
      %s30 = sadd.s32 1, %s21
      %s31 = scalar_select %p28, %s30, %s21
      %p32 = scmp.ge.s32.totalorder %s31, 2
      %s33 = scalar_select %p32, 0, %s31
      %s34 = ssub.s32 %s21, %s33
      %s35 = ssub.s32 %s22, %s29
      %s36 = sor.u32 %s34, %s35
      %p37 = scmp.eq.s32.totalorder %s36, 0
      %s39 = sadd.s32 %s38, 1
      %s40 = scalar_select %p37, %s38, %s39
      %p43 = pneg %p37
      %p44 = scmp.eq.s32.totalorder %s14, 3
      %p45 = por %p43, %p44
      %p46 = scmp.ne.s32.totalorder %s38, %s41
      %p47 = scmp.eq.s32.totalorder %s14, 0
      %p48 = por %p46, %p47
      %p49 = scmp.ne.s32.totalorder %s38, %s41
      %p50 = scmp.eq.s32.totalorder %s19, 3
      %p51 = por %p49, %p50
      %p52 = scmp.ne.s32.totalorder %s41, %s42
      %p53 = scmp.eq.s32.totalorder %s19, 0
      %p54 = por %p52, %p53
      %p55 = scmp.ne.s32.totalorder %s41, %s42
      %p56 = scmp.eq.s32.totalorder %s20, 3
      %p57 = por %p55, %p56
      %p59 = scmp.ne.s32.totalorder %s42, %s58
      %p60 = scmp.eq.s32.totalorder %s20, 0
      %p61 = por %p59, %p60
      %s62 = ssub.s32 %s21, %s33
      %s63 = ssub.s32 %s22, %s29
      %s64 = sor.u32 %s62, %s63
      %p65 = scmp.eq.s32.totalorder %s64, 0
      %s67 = sadd.s32 %s66, 1
      %s68 = scalar_select %p65, %s66, %s67
      %p71 = pneg %p65
      %p72 = scmp.eq.s32.totalorder %s14, 3
      %p73 = por %p71, %p72
      %p74 = scmp.ne.s32.totalorder %s66, %s69
      %p75 = scmp.eq.s32.totalorder %s14, 0
      %p76 = por %p74, %p75
      %p77 = scmp.ne.s32.totalorder %s66, %s69
      %p78 = scmp.eq.s32.totalorder %s19, 3
      %p79 = por %p77, %p78
      %p80 = scmp.ne.s32.totalorder %s69, %s70
      %p81 = scmp.eq.s32.totalorder %s19, 0
      %p82 = por %p80, %p81
      %p83 = scmp.ne.s32.totalorder %s69, %s70
      %p84 = scmp.eq.s32.totalorder %s20, 3
      %p85 = por %p83, %p84
      %p87 = scmp.ne.s32.totalorder %s70, %s86
      %p88 = scmp.eq.s32.totalorder %s20, 0
      %p89 = por %p87, %p88
      %s90 = ssub.s32 %s21, %s33
      %s91 = ssub.s32 %s22, %s29
      %s92 = sor.u32 %s90, %s91
      %p93 = scmp.eq.s32.totalorder %s92, 0
      %s95 = sadd.s32 %s94, 1
      %s96 = scalar_select %p93, %s94, %s95
      %p99 = pneg %p93
      %p100 = scmp.eq.s32.totalorder %s14, 3
      %p101 = por %p99, %p100
      %p102 = scmp.ne.s32.totalorder %s94, %s97
      %p103 = scmp.eq.s32.totalorder %s14, 0
      %p104 = por %p102, %p103
      %p105 = scmp.ne.s32.totalorder %s94, %s97
      %p106 = scmp.eq.s32.totalorder %s19, 3
      %p107 = por %p105, %p106
      %p108 = scmp.ne.s32.totalorder %s97, %s98
      %p109 = scmp.eq.s32.totalorder %s19, 0
      %p110 = por %p108, %p109
      %p111 = scmp.ne.s32.totalorder %s97, %s98
      %p112 = scmp.eq.s32.totalorder %s20, 3
      %p113 = por %p111, %p112
      %p115 = scmp.ne.s32.totalorder %s98, %s114
      %p116 = scmp.eq.s32.totalorder %s20, 0
      %p117 = por %p115, %p116
      %s119 = sadd.s32 %s118, 1
      %p122 = scmp.eq.s32.totalorder %s14, 3
      %p123 = scmp.ne.s32.totalorder %s118, %s120
      %p124 = scmp.eq.s32.totalorder %s14, 0
      %p125 = por %p123, %p124
      %p126 = scmp.ne.s32.totalorder %s118, %s120
      %p127 = scmp.eq.s32.totalorder %s19, 3
      %p128 = por %p126, %p127
      %p129 = scmp.ne.s32.totalorder %s120, %s121
      %p130 = scmp.eq.s32.totalorder %s19, 0
      %p131 = por %p129, %p130
      %p132 = scmp.ne.s32.totalorder %s120, %s121
      %p133 = scmp.eq.s32.totalorder %s20, 3
      %p134 = por %p132, %p133
      %p136 = scmp.ne.s32.totalorder %s121, %s135
      %p137 = scmp.eq.s32.totalorder %s20, 0
      %p138 = por %p136, %p137
      %s140 = sadd.s32 %s139, 1
      %p143 = scmp.eq.s32.totalorder %s14, 3
      %p144 = scmp.ne.s32.totalorder %s139, %s141
      %p145 = scmp.eq.s32.totalorder %s14, 0
      %p146 = por %p144, %p145
      %p147 = scmp.ne.s32.totalorder %s139, %s141
      %p148 = scmp.eq.s32.totalorder %s19, 3
      %p149 = por %p147, %p148
      %p150 = scmp.ne.s32.totalorder %s141, %s142
      %p151 = scmp.eq.s32.totalorder %s19, 0
      %p152 = por %p150, %p151
      %p153 = scmp.ne.s32.totalorder %s141, %s142
      %p154 = scmp.eq.s32.totalorder %s20, 3
      %p155 = por %p153, %p154
      %p157 = scmp.ne.s32.totalorder %s142, %s156
      %p158 = scmp.eq.s32.totalorder %s20, 0
      %p159 = por %p157, %p158
      %s161 = sadd.s32 %s160, 1
      %p164 = scmp.eq.s32.totalorder %s14, 3
      %p165 = scmp.ne.s32.totalorder %s160, %s162
      %p166 = scmp.eq.s32.totalorder %s14, 0
      %p167 = por %p165, %p166
      %p168 = scmp.ne.s32.totalorder %s160, %s162
      %p169 = scmp.eq.s32.totalorder %s19, 3
      %p170 = por %p168, %p169
      %p171 = scmp.ne.s32.totalorder %s162, %s163
      %p172 = scmp.eq.s32.totalorder %s19, 0
      %p173 = por %p171, %p172
      %p174 = scmp.ne.s32.totalorder %s162, %s163
      %p175 = scmp.eq.s32.totalorder %s20, 3
      %p176 = por %p174, %p175
      %p178 = scmp.ne.s32.totalorder %s163, %s177
      %p179 = scmp.eq.s32.totalorder %s20, 0
      %p180 = por %p178, %p179
      %p181 = scmp.le.s32.totalorder 1, %s14
      %p182 = scmp.lt.s32.totalorder %s14, 5
      %p183 = pnand %p181, %p182
      %p184 = pneg %p183
      // Predicated region
      $region9: #{tpu_custom_call.1} parent=5 // pred_check
        _
      $region10: #{tpu_custom_call.1} parent=5 // pred_check_branch
        %186 = sbr.rel (%p183) target = $region12
      $region11: #{tpu_custom_call.1} parent=5 // pred_region
        %s187 = ssub.s32 %s14, 1
        // Predicated region
        $region13: #{tpu_custom_call.1} parent=11 // pred_check
          %p188 = pneg %p131
        $region14: #{tpu_custom_call.1} parent=11 // pred_check_branch
          %190 = sbr.rel (%p188) target = $region16
        $region15: #{tpu_custom_call.1} parent=11 // pred_region
          _
        $region16: #{tpu_custom_call.1} parent=11 // pred_fallthru
          _
      $region12: #{tpu_custom_call.1} parent=5 // pred_fallthru
        _
      %p191 = scmp.lt.s32.totalorder %s14, 4
      // Predicated region
      $region17: #{tpu_custom_call.1} parent=5 // pred_check
        %p192 = pneg %p191
      $region18: #{tpu_custom_call.1} parent=5 // pred_check_branch
        %194 = sbr.rel (%p192) target = $region20
      $region19: #{tpu_custom_call.1} parent=5 // pred_region
        // Predicated region
        $region21: #{tpu_custom_call.1} parent=19 // pred_check
          %p195 = pneg %p48
        $region22: #{tpu_custom_call.1} parent=19 // pred_check_branch
          %197 = sbr.rel (%p195) target = $region24
        $region23: #{tpu_custom_call.1} parent=19 // pred_region
          %s198 = smul.u32 8, %s22
          %p199 = scmp.lt.s32.totalorder %s21, 1
          %s200 = scalar_select %p199, %s21, 1
          %p201 = scmp.lt.s32.totalorder %s198, 15
          %s202 = scalar_select %p201, %s198, 15
          %s203 = smul.addr %s202, 3
          %s204 = smul.addr %s200, 48
          %s205 = sadd.s32 %s203, %s204
          %s206 = smul.addr %s205, 8
          %s207 = scalar_lea.vmem %s0, %s206
          %s208 = smul.u32 8, %s22
        $region24: #{tpu_custom_call.1} parent=19 // pred_fallthru
          _
        // Predicated region
        $region25: #{tpu_custom_call.1} parent=19 // pred_check
          %p209 = pneg %p76
        $region26: #{tpu_custom_call.1} parent=19 // pred_check_branch
          %211 = sbr.rel (%p209) target = $region28
        $region27: #{tpu_custom_call.1} parent=19 // pred_region
          %s212 = smul.u32 8, %s22
          %p213 = scmp.lt.s32.totalorder %s21, 1
          %s214 = scalar_select %p213, %s21, 1
          %p215 = scmp.lt.s32.totalorder %s212, 15
          %s216 = scalar_select %p215, %s212, 15
          %s217 = smul.addr %s216, 3
          %s218 = smul.addr %s214, 48
          %s219 = sadd.s32 %s217, %s218
          %s220 = smul.addr %s219, 8
          %s221 = scalar_lea.vmem %s1, %s220
          %s222 = smul.u32 8, %s22
        $region28: #{tpu_custom_call.1} parent=19 // pred_fallthru
          _
        // Predicated region
        $region29: #{tpu_custom_call.1} parent=19 // pred_check
          %p223 = pneg %p104
        $region30: #{tpu_custom_call.1} parent=19 // pred_check_branch
          %225 = sbr.rel (%p223) target = $region32
        $region31: #{tpu_custom_call.1} parent=19 // pred_region
          %s226 = smul.u32 8, %s22
          %p227 = scmp.lt.s32.totalorder %s21, 1
          %s228 = scalar_select %p227, %s21, 1
          %p229 = scmp.lt.s32.totalorder %s226, 15
          %s230 = scalar_select %p229, %s226, 15
          %s231 = smul.addr %s230, 3
          %s232 = smul.addr %s228, 48
          %s233 = sadd.s32 %s231, %s232
          %s234 = smul.addr %s233, 8
          %s235 = scalar_lea.vmem %s2, %s234
          %s236 = smul.u32 8, %s22
        $region32: #{tpu_custom_call.1} parent=19 // pred_fallthru
          _
      $region20: #{tpu_custom_call.1} parent=5 // pred_fallthru
        _
      %p237 = scmp.le.s32.totalorder 1, %s14
      %p238 = scmp.lt.s32.totalorder %s14, 5
      %p239 = pnand %p237, %p238
      %p240 = pneg %p239
      // Predicated region
      $region33: #{tpu_custom_call.1} parent=5 // pred_check
        _
      $region34: #{tpu_custom_call.1} parent=5 // pred_check_branch
        %242 = sbr.rel (%p239) target = $region36
      $region35: #{tpu_custom_call.1} parent=5 // pred_region
        %s243 = ssub.s32 %s14, 1
        %s244 = smul.u32 8, %s24
        %p245 = scmp.lt.s32.totalorder %s23, 1
        %s246 = scalar_select %p245, %s23, 1
        %p247 = scmp.lt.s32.totalorder %s244, 15
        %s248 = scalar_select %p247, %s244, 15
        %s249 = smul.addr %s248, 3
        %s250 = smul.addr %s246, 48
        %s251 = sadd.s32 %s249, %s250
        %s252 = smul.addr %s251, 8
        %s253 = scalar_lea.vmem %s0, %s252
        %p254 = pneg %p54
        %p255 = pneg %p51
        %s256 = smul.u32 8, %s24
        %p257 = scmp.lt.s32.totalorder %s23, 1
        %s258 = scalar_select %p257, %s23, 1
        %p259 = scmp.lt.s32.totalorder %s256, 15
        %s260 = scalar_select %p259, %s256, 15
        %s261 = smul.addr %s260, 3
        %s262 = smul.addr %s258, 48
        %s263 = sadd.s32 %s261, %s262
        %s264 = smul.addr %s263, 8
        %s265 = scalar_lea.vmem %s1, %s264
        %p266 = pneg %p82
        %p267 = pneg %p79
        %s268 = smul.u32 8, %s24
        %p269 = scmp.lt.s32.totalorder %s23, 1
        %s270 = scalar_select %p269, %s23, 1
        %p271 = scmp.lt.s32.totalorder %s268, 15
        %s272 = scalar_select %p271, %s268, 15
        %s273 = smul.addr %s272, 3
        %s274 = smul.addr %s270, 48
        %s275 = sadd.s32 %s273, %s274
        %s276 = smul.addr %s275, 8
        %s277 = scalar_lea.vmem %s2, %s276
        %p278 = pneg %p110
        %p279 = pneg %p107
        %p280 = pneg %p131
        %p281 = pneg %p128
        %p282 = pneg %p152
        %p283 = pneg %p149
        %p284 = pneg %p173
        %p285 = pneg %p170
        %s286 = smul.u32 8, %s24
        %p287 = scmp.lt.s32.totalorder %s23, 1
        %s288 = scalar_select %p287, %s23, 1
        %p289 = scmp.lt.s32.totalorder %s286, 15
        %s290 = scalar_select %p289, %s286, 15
        %s291 = smul.addr %s290, 3
        %s292 = smul.addr %s288, 48
        %s293 = sadd.s32 %s291, %s292
        %s294 = smul.addr %s293, 8
        %s295 = scalar_lea.vmem %s0, %s294
        %s296 = smul.u32 8, %s24
        %s297 = smul.u32 8, %s24
        %p298 = scmp.lt.s32.totalorder %s23, 1
        %s299 = scalar_select %p298, %s23, 1
        %p300 = scmp.lt.s32.totalorder %s297, 15
        %s301 = scalar_select %p300, %s297, 15
        %s302 = smul.addr %s301, 3
        %s303 = smul.addr %s299, 48
        %s304 = sadd.s32 %s302, %s303
        %s305 = smul.addr %s304, 8
        %s306 = scalar_lea.vmem %s1, %s305
        %s307 = smul.u32 8, %s24
        %s308 = smul.u32 8, %s24
        %p309 = scmp.lt.s32.totalorder %s23, 1
        %s310 = scalar_select %p309, %s23, 1
        %p311 = scmp.lt.s32.totalorder %s308, 15
        %s312 = scalar_select %p311, %s308, 15
        %s313 = smul.addr %s312, 3
        %s314 = smul.addr %s310, 48
        %s315 = sadd.s32 %s313, %s314
        %s316 = smul.addr %s315, 8
        %s317 = scalar_lea.vmem %s2, %s316
        %s318 = smul.u32 8, %s24
        %p319 = scmp.eq.s32.totalorder %s23, 0
        %p320 = scmp.eq.s32.totalorder %s24, 0
        %p321 = pnand %p319, %p320
        %p322 = pneg %p321
        // Predicated region
        $region37: #{tpu_custom_call.1} parent=35 // pred_check
          _
        $region38: #{tpu_custom_call.1} parent=35 // pred_check_branch
          %324 = sbr.rel (%p321) target = $region40
        $region39: #{tpu_custom_call.1} parent=35 // pred_region
          %vm325 = vcmask 516096
          %326 = vst.msk [vmem:[#allocation2] sm:$0x1] %vm325, 0.0
          %327 = vst.msk [vmem:[#allocation4] sm:$0x1] %vm325, 0.0
        $region40: #{tpu_custom_call.1} parent=35 // pred_fallthru
          _
        %v328 = vld [vmem:[%s295] sm:$0xff]
        %v329 = vld [vmem:[%s295 + $0x8] sm:$0xff]
        %v330 = vld [vmem:[%s295 + $0x10] sm:$0x3]
        %v331 = vld [vmem:[%s295 + $0x18] sm:$0xff]
        %v332 = vld [vmem:[%s295 + $0x20] sm:$0xff]
        %v333 = vld [vmem:[%s295 + $0x28] sm:$0x3]
        %v334 = vld [vmem:[%s295 + $0x30] sm:$0xff]
        %v335 = vld [vmem:[%s295 + $0x38] sm:$0xff]
        %v336 = vld [vmem:[%s295 + $0x40] sm:$0x3]
        %v337 = vld [vmem:[%s295 + $0x48] sm:$0xff]
        %v338 = vld [vmem:[%s295 + $0x50] sm:$0xff]
        %v339 = vld [vmem:[%s295 + $0x58] sm:$0x3]
        %v340 = vld [vmem:[%s295 + $0x60] sm:$0xff]
        %v341 = vld [vmem:[%s295 + $0x68] sm:$0xff]
        %v342 = vld [vmem:[%s295 + $0x70] sm:$0x3]
        %v343 = vld [vmem:[%s295 + $0x78] sm:$0xff]
        %v344 = vld [vmem:[%s295 + $0x80] sm:$0xff]
        %v345 = vld [vmem:[%s295 + $0x88] sm:$0x3]
        %v346 = vld [vmem:[%s295 + $0x90] sm:$0xff]
        %v347 = vld [vmem:[%s295 + $0x98] sm:$0xff]
        %v348 = vld [vmem:[%s295 + $0xa0] sm:$0x3]
        %v349 = vld [vmem:[%s295 + $0xa8] sm:$0xff]
        %v350 = vld [vmem:[%s295 + $0xb0] sm:$0xff]
        %v351 = vld [vmem:[%s295 + $0xb8] sm:$0x3]
        %v352 = vld [vmem:[%s306] sm:$0xff]
        %v353 = vld [vmem:[%s306 + $0x8] sm:$0xff]
        %v354 = vld [vmem:[%s306 + $0x10] sm:$0x3]
        %v355 = vld [vmem:[%s306 + $0x18] sm:$0xff]
        %v356 = vld [vmem:[%s306 + $0x20] sm:$0xff]
        %v357 = vld [vmem:[%s306 + $0x28] sm:$0x3]
        %v358 = vld [vmem:[%s306 + $0x30] sm:$0xff]
        %v359 = vld [vmem:[%s306 + $0x38] sm:$0xff]
        %v360 = vld [vmem:[%s306 + $0x40] sm:$0x3]
        %v361 = vld [vmem:[%s306 + $0x48] sm:$0xff]
        %v362 = vld [vmem:[%s306 + $0x50] sm:$0xff]
        %v363 = vld [vmem:[%s306 + $0x58] sm:$0x3]
        %v364 = vld [vmem:[%s306 + $0x60] sm:$0xff]
        %v365 = vld [vmem:[%s306 + $0x68] sm:$0xff]
        %v366 = vld [vmem:[%s306 + $0x70] sm:$0x3]
        %v367 = vld [vmem:[%s306 + $0x78] sm:$0xff]
        %v368 = vld [vmem:[%s306 + $0x80] sm:$0xff]
        %v369 = vld [vmem:[%s306 + $0x88] sm:$0x3]
        %v370 = vld [vmem:[%s306 + $0x90] sm:$0xff]
        %v371 = vld [vmem:[%s306 + $0x98] sm:$0xff]
        %v372 = vld [vmem:[%s306 + $0xa0] sm:$0x3]
        %v373 = vld [vmem:[%s306 + $0xa8] sm:$0xff]
        %v374 = vld [vmem:[%s306 + $0xb0] sm:$0xff]
        %v375 = vld [vmem:[%s306 + $0xb8] sm:$0x3]
        %v376 = vld [vmem:[%s317] sm:$0xff]
        %v377 = vld [vmem:[%s317 + $0x8] sm:$0xff]
        %v378 = vld [vmem:[%s317 + $0x10] sm:$0x3]
        %v379 = vld [vmem:[%s317 + $0x18] sm:$0xff]
        %v380 = vld [vmem:[%s317 + $0x20] sm:$0xff]
        %v381 = vld [vmem:[%s317 + $0x28] sm:$0x3]
        %v382 = vld [vmem:[%s317 + $0x30] sm:$0xff]
        %v383 = vld [vmem:[%s317 + $0x38] sm:$0xff]
        %v384 = vld [vmem:[%s317 + $0x40] sm:$0x3]
        %v385 = vld [vmem:[%s317 + $0x48] sm:$0xff]
        %v386 = vld [vmem:[%s317 + $0x50] sm:$0xff]
        %v387 = vld [vmem:[%s317 + $0x58] sm:$0x3]
        %v388 = vld [vmem:[%s317 + $0x60] sm:$0xff]
        %v389 = vld [vmem:[%s317 + $0x68] sm:$0xff]
        %v390 = vld [vmem:[%s317 + $0x70] sm:$0x3]
        %v391 = vld [vmem:[%s317 + $0x78] sm:$0xff]
        %v392 = vld [vmem:[%s317 + $0x80] sm:$0xff]
        %v393 = vld [vmem:[%s317 + $0x88] sm:$0x3]
        %v394 = vld [vmem:[%s317 + $0x90] sm:$0xff]
        %v395 = vld [vmem:[%s317 + $0x98] sm:$0xff]
        %v396 = vld [vmem:[%s317 + $0xa0] sm:$0x3]
        %v397 = vld [vmem:[%s317 + $0xa8] sm:$0xff]
        %v398 = vld [vmem:[%s317 + $0xb0] sm:$0xff]
        %v399 = vld [vmem:[%s317 + $0xb8] sm:$0x3]
        %v400 = vld [vmem:[%s3] sm:$0xf]
        %vm425 = vcmask 1046528
        %v426 = vrot.slane %v328, 1
        %v427 = vrot.slane %v329, 1
        %v428 = vsel %vm425, %v426, %v427
        %v429 = vrot.slane %v330, 1
        %v430 = vsel %vm425, %v427, %v429
        %v431 = vrot.slane %v331, 1
        %v432 = vrot.slane %v332, 1
        %v433 = vsel %vm425, %v431, %v432
        %v434 = vrot.slane %v333, 1
        %v435 = vsel %vm425, %v432, %v434
        %v436 = vrot.slane %v334, 1
        %v437 = vrot.slane %v335, 1
        %v438 = vsel %vm425, %v436, %v437
        %v439 = vrot.slane %v336, 1
        %v440 = vsel %vm425, %v437, %v439
        %v441 = vrot.slane %v337, 1
        %v442 = vrot.slane %v338, 1
        %v443 = vsel %vm425, %v441, %v442
        %v444 = vrot.slane %v339, 1
        %v445 = vsel %vm425, %v442, %v444
        %v446 = vrot.slane %v340, 1
        %v447 = vrot.slane %v341, 1
        %v448 = vsel %vm425, %v446, %v447
        %v449 = vrot.slane %v342, 1
        %v450 = vsel %vm425, %v447, %v449
        %v451 = vrot.slane %v343, 1
        %v452 = vrot.slane %v344, 1
        %v453 = vsel %vm425, %v451, %v452
        %v454 = vrot.slane %v345, 1
        %v455 = vsel %vm425, %v452, %v454
        %v456 = vrot.slane %v346, 1
        %v457 = vrot.slane %v347, 1
        %v458 = vsel %vm425, %v456, %v457
        %v459 = vrot.slane %v348, 1
        %v460 = vsel %vm425, %v457, %v459
        %v461 = vrot.slane %v349, 1
        %v462 = vrot.slane %v350, 1
        %v463 = vsel %vm425, %v461, %v462
        %v464 = vrot.slane %v351, 1
        %v465 = vsel %vm425, %v462, %v464
        %s466 = scalar_lea.vmem %s3, 4
        %v467 = vld [vmem:[%s466] sm:$0xf]
        %vm468 = vcmask 31744
        %v469 = vsel %vm468, %v428, 0
        %v471 = vsel %vm468, %v430, 0
        %v473 = vsel %vm468, %v433, 0
        %v475 = vsel %vm468, %v435, 0
        %v477 = vsel %vm468, %v438, 0
        %v479 = vsel %vm468, %v440, 0
        %v481 = vsel %vm468, %v443, 0
        %v483 = vsel %vm468, %v445, 0
        %v485 = vsel %vm468, %v448, 0
        %v487 = vsel %vm468, %v450, 0
        %v489 = vsel %vm468, %v453, 0
        %v491 = vsel %vm468, %v455, 0
        %v493 = vsel %vm468, %v458, 0
        %v495 = vsel %vm468, %v460, 0
        %v497 = vsel %vm468, %v463, 0
        %v499 = vsel %vm468, %v465, 0
        %vm501 = vcmask 1043456
        %v503 = vsel %vm501, %v467, 0
        %505 = vmatprep.subr.mxu0 0.0
        %506 = vmatpush1.msra.mxu0 %v503
        %507 = vmatprep.subr.mxu0 0.0
        %508 = vmatpush1.msra.mxu0 0.0
        %509 = vmatprep.subr.mxu0 0.0
        %510 = vmatpush1.msra.mxu0 0.0
        %511 = vmatprep.subr.mxu0 0.0
        %512 = vmatpush1.msra.mxu0 0.0
        %513 = vmatprep.subr.mxu0 0.0
        %514 = vmatpush1.msra.mxu0 0.0
        %515 = vmatprep.subr.mxu0 0.0
        %516 = vmatpush1.msra.mxu0 0.0
        %517 = vmatprep.subr.mxu0 0.0
        %518 = vmatpush1.msra.mxu0 0.0
        %519 = vmatprep.subr.mxu0 0.0
        %520 = vmatpush1.msra.mxu0 0.0
        %521 = vmatprep.subr.mxu0 0.0
        %522 = vmatpush1.msra.mxu0 0.0
        %523 = vmatprep.subr.mxu0 0.0
        %524 = vmatpush1.msra.mxu0 0.0
        %525 = vmatprep.subr.mxu0 0.0
        %526 = vmatpush1.msra.mxu0 0.0
        %527 = vmatprep.subr.mxu0 0.0
        %528 = vmatpush1.msra.mxu0 0.0
        %529 = vmatprep.subr.mxu0 0.0
        %530 = vmatpush1.msra.mxu0 0.0
        %531 = vmatprep.subr.mxu0 0.0
        %532 = vmatpush1.msra.mxu0 0.0
        %533 = vmatprep.subr.mxu0 0.0
        %534 = vmatpush1.msra.mxu0 0.0
        %535 = vmatprep.subr.mxu0 0.0
        %536 = vmatpush1.msra.mxu0 0.0
        %537 = vmatprep.subr.mxu0 0.0
        %538 = vmatpush1.msra.mxu0 0.0
        %539 = vmatprep.subr.mxu0 0.0
        %540 = vmatpush1.msra.mxu0 0.0
        %541 = vmatprep.subr.mxu0 0.0
        %542 = vmatpush1.msra.mxu0 0.0
        %543 = vmatprep.subr.mxu0 0.0
        %544 = vmatpush1.msra.mxu0 0.0
        %545 = vmatprep.subr.mxu0 0.0
        %546 = vmatpush1.msra.mxu0 0.0
        %547 = vmatprep.subr.mxu0 0.0
        %548 = vmatpush1.msra.mxu0 0.0
        %549 = vmatprep.subr.mxu0 0.0
        %550 = vmatpush1.msra.mxu0 0.0
        %551 = vmatprep.subr.mxu0 0.0
        %552 = vmatpush1.msra.mxu0 0.0
        %553 = vmatprep.subr.mxu0 0.0
        %554 = vmatpush1.msra.mxu0 0.0
        %555 = vmatprep.subr.mxu0 0.0
        %556 = vmatpush1.msra.mxu0 0.0
        %557 = vmatprep.subr.mxu0 0.0
        %558 = vmatpush1.msra.mxu0 0.0
        %559 = vmatprep.subr.mxu0 0.0
        %560 = vmatpush1.msra.mxu0 0.0
        %561 = vmatprep.subr.mxu0 0.0
        %562 = vmatpush1.msra.mxu0 0.0
        %563 = vmatprep.subr.mxu0 0.0
        %564 = vmatpush1.msra.mxu0 0.0
        %565 = vmatprep.subr.mxu0 0.0
        %566 = vmatpush1.msra.mxu0 0.0
        %567 = vmatprep.subr.mxu0 0.0
        %568 = vmatpush1.msra.mxu0 0.0
        %569 = vmatprep.mubr.f32.mxu0 0.0
        %570 = vmatmul.mubr.f32.gmra.mrb[0].mxu0 %v469
        %v571 = vpop.f32.mrb[0].mxu0
        %v572 = vadd.f32 0.0, %v571
        %v573 = vpop.f32.mrb[0].mxu0
        %574 = vmatprep.mubr.f32.mxu0 0.0
        %575 = vmatmul.mubr.f32.gmra.mrb[0].mxu0 %v471
        %v576 = vpop.f32.mrb[0].mxu0
        %v577 = vadd.f32 0.0, %v576
        %v578 = vpop.f32.mrb[0].mxu0
        %579 = vmatprep.mubr.f32.mxu0 0.0
        %580 = vmatmul.mubr.f32.gmra.mrb[0].mxu0 %v473
        %v581 = vpop.f32.mrb[0].mxu0
        %v582 = vadd.f32 0.0, %v581
        %v583 = vpop.f32.mrb[0].mxu0
        %584 = vmatprep.mubr.f32.mxu0 0.0
        %585 = vmatmul.mubr.f32.gmra.mrb[0].mxu0 %v475
        %v586 = vpop.f32.mrb[0].mxu0
        %v587 = vadd.f32 0.0, %v586
        %v588 = vpop.f32.mrb[0].mxu0
        %589 = vmatprep.mubr.f32.mxu0 0.0
        %590 = vmatmul.mubr.f32.gmra.mrb[0].mxu0 %v477
        %v591 = vpop.f32.mrb[0].mxu0
        %v592 = vadd.f32 0.0, %v591
        %v593 = vpop.f32.mrb[0].mxu0
        %594 = vmatprep.mubr.f32.mxu0 0.0
        %595 = vmatmul.mubr.f32.gmra.mrb[0].mxu0 %v479
        %v596 = vpop.f32.mrb[0].mxu0
        %v597 = vadd.f32 0.0, %v596
        %v598 = vpop.f32.mrb[0].mxu0
        %599 = vmatprep.mubr.f32.mxu0 0.0
        %600 = vmatmul.mubr.f32.gmra.mrb[0].mxu0 %v481
        %v601 = vpop.f32.mrb[0].mxu0
        %v602 = vadd.f32 0.0, %v601
        %v603 = vpop.f32.mrb[0].mxu0
        %604 = vmatprep.mubr.f32.mxu0 0.0
        %605 = vmatmul.mubr.f32.gmra.mrb[0].mxu0 %v483
        %v606 = vpop.f32.mrb[0].mxu0
        %v607 = vadd.f32 0.0, %v606
        %v608 = vpop.f32.mrb[0].mxu0
        %609 = vmatprep.mubr.f32.mxu0 0.0
        %610 = vmatmul.mubr.f32.gmra.mrb[0].mxu0 %v485
        %v611 = vpop.f32.mrb[0].mxu0
        %v612 = vadd.f32 0.0, %v611
        %v613 = vpop.f32.mrb[0].mxu0
        %614 = vmatprep.mubr.f32.mxu0 0.0
        %615 = vmatmul.mubr.f32.gmra.mrb[0].mxu0 %v487
        %v616 = vpop.f32.mrb[0].mxu0
        %v617 = vadd.f32 0.0, %v616
        %v618 = vpop.f32.mrb[0].mxu0
        %619 = vmatprep.mubr.f32.mxu0 0.0
        %620 = vmatmul.mubr.f32.gmra.mrb[0].mxu0 %v489
        %v621 = vpop.f32.mrb[0].mxu0
        %v622 = vadd.f32 0.0, %v621
        %v623 = vpop.f32.mrb[0].mxu0
        %624 = vmatprep.mubr.f32.mxu0 0.0
        %625 = vmatmul.mubr.f32.gmra.mrb[0].mxu0 %v491
        %v626 = vpop.f32.mrb[0].mxu0
        %v627 = vadd.f32 0.0, %v626
        %v628 = vpop.f32.mrb[0].mxu0
        %629 = vmatprep.mubr.f32.mxu0 0.0
        %630 = vmatmul.mubr.f32.gmra.mrb[0].mxu0 %v493
        %v631 = vpop.f32.mrb[0].mxu0
        %v632 = vadd.f32 0.0, %v631
        %v633 = vpop.f32.mrb[0].mxu0
        %634 = vmatprep.mubr.f32.mxu0 0.0
        %635 = vmatmul.mubr.f32.gmra.mrb[0].mxu0 %v495
        %v636 = vpop.f32.mrb[0].mxu0
        %v637 = vadd.f32 0.0, %v636
        %v638 = vpop.f32.mrb[0].mxu0
        %639 = vmatprep.mubr.f32.mxu0 0.0
        %640 = vmatmul.mubr.f32.gmra.mrb[0].mxu0 %v497
        %v641 = vpop.f32.mrb[0].mxu0
        %v642 = vadd.f32 0.0, %v641
        %v643 = vpop.f32.mrb[0].mxu0
        %644 = vmatprep.mubr.f32.mxu0 0.0
        %645 = vmatmul.mubr.f32.gmra.mrb[0].mxu0 %v499
        %v646 = vpop.f32.mrb[0].mxu0
        %v647 = vadd.f32 0.0, %v646
        %v648 = vpop.f32.mrb[0].mxu0
        %649 = vdwg.mxu0
        %v650 = vsel %vm468, %v328, 0
        %v652 = vsel %vm468, %v329, 0
        %v654 = vsel %vm468, %v331, 0
        %v656 = vsel %vm468, %v332, 0
        %v658 = vsel %vm468, %v334, 0
        %v660 = vsel %vm468, %v335, 0
        %v662 = vsel %vm468, %v337, 0
        %v664 = vsel %vm468, %v338, 0
        %v666 = vsel %vm468, %v340, 0
        %v668 = vsel %vm468, %v341, 0
        %v670 = vsel %vm468, %v343, 0
        %v672 = vsel %vm468, %v344, 0
        %v674 = vsel %vm468, %v346, 0
        %v676 = vsel %vm468, %v347, 0
        %v678 = vsel %vm468, %v349, 0
        %v680 = vsel %vm468, %v350, 0
        %v683 = vsel %vm501, %v400, 0
        %685 = vmatprep.subr.mxu0 0.0
        %686 = vmatpush1.msra.mxu0 %v683
        %687 = vmatprep.subr.mxu0 0.0
        %688 = vmatpush1.msra.mxu0 0.0
        %689 = vmatprep.subr.mxu0 0.0
        %690 = vmatpush1.msra.mxu0 0.0
        %691 = vmatprep.subr.mxu0 0.0
        %692 = vmatpush1.msra.mxu0 0.0
        %693 = vmatprep.subr.mxu0 0.0
        %694 = vmatpush1.msra.mxu0 0.0
        %695 = vmatprep.subr.mxu0 0.0
        %696 = vmatpush1.msra.mxu0 0.0
        %697 = vmatprep.subr.mxu0 0.0
        %698 = vmatpush1.msra.mxu0 0.0
        %699 = vmatprep.subr.mxu0 0.0
        %700 = vmatpush1.msra.mxu0 0.0
        %701 = vmatprep.subr.mxu0 0.0
        %702 = vmatpush1.msra.mxu0 0.0
        %703 = vmatprep.subr.mxu0 0.0
        %704 = vmatpush1.msra.mxu0 0.0
        %705 = vmatprep.subr.mxu0 0.0
        %706 = vmatpush1.msra.mxu0 0.0
        %707 = vmatprep.subr.mxu0 0.0
        %708 = vmatpush1.msra.mxu0 0.0
        %709 = vmatprep.subr.mxu0 0.0
        %710 = vmatpush1.msra.mxu0 0.0
        %711 = vmatprep.subr.mxu0 0.0
        %712 = vmatpush1.msra.mxu0 0.0
        %713 = vmatprep.subr.mxu0 0.0
        %714 = vmatpush1.msra.mxu0 0.0
        %715 = vmatprep.subr.mxu0 0.0
        %716 = vmatpush1.msra.mxu0 0.0
        %717 = vmatprep.subr.mxu0 0.0
        %718 = vmatpush1.msra.mxu0 0.0
        %719 = vmatprep.subr.mxu0 0.0
        %720 = vmatpush1.msra.mxu0 0.0
        %721 = vmatprep.subr.mxu0 0.0
        %722 = vmatpush1.msra.mxu0 0.0
        %723 = vmatprep.subr.mxu0 0.0
        %724 = vmatpush1.msra.mxu0 0.0
        %725 = vmatprep.subr.mxu0 0.0
        %726 = vmatpush1.msra.mxu0 0.0
        %727 = vmatprep.subr.mxu0 0.0
        %728 = vmatpush1.msra.mxu0 0.0
        %729 = vmatprep.subr.mxu0 0.0
        %730 = vmatpush1.msra.mxu0 0.0
        %731 = vmatprep.subr.mxu0 0.0
        %732 = vmatpush1.msra.mxu0 0.0
        %733 = vmatprep.subr.mxu0 0.0
        %734 = vmatpush1.msra.mxu0 0.0
        %735 = vmatprep.subr.mxu0 0.0
        %736 = vmatpush1.msra.mxu0 0.0
        %737 = vmatprep.subr.mxu0 0.0
        %738 = vmatpush1.msra.mxu0 0.0
        %739 = vmatprep.subr.mxu0 0.0
        %740 = vmatpush1.msra.mxu0 0.0
        %741 = vmatprep.subr.mxu0 0.0
        %742 = vmatpush1.msra.mxu0 0.0
        %743 = vmatprep.subr.mxu0 0.0
        %744 = vmatpush1.msra.mxu0 0.0
        %745 = vmatprep.subr.mxu0 0.0
        %746 = vmatpush1.msra.mxu0 0.0
        %747 = vmatprep.subr.mxu0 0.0
        %748 = vmatpush1.msra.mxu0 0.0
        %749 = vmatprep.mubr.f32.mxu0 0.0
        %750 = vmatmul.mubr.f32.gmra.mrb[0].mxu0 %v650
        %v751 = vpop.f32.mrb[0].mxu0
        %v752 = vadd.f32 %v572, %v751
        %v753 = vpop.f32.mrb[0].mxu0
        %754 = vmatprep.mubr.f32.mxu0 0.0
        %755 = vmatmul.mubr.f32.gmra.mrb[0].mxu0 %v652
        %v756 = vpop.f32.mrb[0].mxu0
        %v757 = vadd.f32 %v577, %v756
        %v758 = vpop.f32.mrb[0].mxu0
        %759 = vmatprep.mubr.f32.mxu0 0.0
        %760 = vmatmul.mubr.f32.gmra.mrb[0].mxu0 %v654
        %v761 = vpop.f32.mrb[0].mxu0
        %v762 = vadd.f32 %v582, %v761
        %v763 = vpop.f32.mrb[0].mxu0
        %764 = vmatprep.mubr.f32.mxu0 0.0
        %765 = vmatmul.mubr.f32.gmra.mrb[0].mxu0 %v656
        %v766 = vpop.f32.mrb[0].mxu0
        %v767 = vadd.f32 %v587, %v766
        %v768 = vpop.f32.mrb[0].mxu0
        %769 = vmatprep.mubr.f32.mxu0 0.0
        %770 = vmatmul.mubr.f32.gmra.mrb[0].mxu0 %v658
        %v771 = vpop.f32.mrb[0].mxu0
        %v772 = vadd.f32 %v592, %v771
        %v773 = vpop.f32.mrb[0].mxu0
        %774 = vmatprep.mubr.f32.mxu0 0.0
        %775 = vmatmul.mubr.f32.gmra.mrb[0].mxu0 %v660
        %v776 = vpop.f32.mrb[0].mxu0
        %v777 = vadd.f32 %v597, %v776
        %v778 = vpop.f32.mrb[0].mxu0
        %779 = vmatprep.mubr.f32.mxu0 0.0
        %780 = vmatmul.mubr.f32.gmra.mrb[0].mxu0 %v662
        %v781 = vpop.f32.mrb[0].mxu0
        %v782 = vadd.f32 %v602, %v781
        %v783 = vpop.f32.mrb[0].mxu0
        %784 = vmatprep.mubr.f32.mxu0 0.0
        %785 = vmatmul.mubr.f32.gmra.mrb[0].mxu0 %v664
        %v786 = vpop.f32.mrb[0].mxu0
        %v787 = vadd.f32 %v607, %v786
        %v788 = vpop.f32.mrb[0].mxu0
        %789 = vmatprep.mubr.f32.mxu0 0.0
        %790 = vmatmul.mubr.f32.gmra.mrb[0].mxu0 %v666
        %v791 = vpop.f32.mrb[0].mxu0
        %v792 = vadd.f32 %v612, %v791
        %v793 = vpop.f32.mrb[0].mxu0
        %794 = vmatprep.mubr.f32.mxu0 0.0
        %795 = vmatmul.mubr.f32.gmra.mrb[0].mxu0 %v668
        %v796 = vpop.f32.mrb[0].mxu0
        %v797 = vadd.f32 %v617, %v796
        %v798 = vpop.f32.mrb[0].mxu0
        %799 = vmatprep.mubr.f32.mxu0 0.0
        %800 = vmatmul.mubr.f32.gmra.mrb[0].mxu0 %v670
        %v801 = vpop.f32.mrb[0].mxu0
        %v802 = vadd.f32 %v622, %v801
        %v803 = vpop.f32.mrb[0].mxu0
        %804 = vmatprep.mubr.f32.mxu0 0.0
        %805 = vmatmul.mubr.f32.gmra.mrb[0].mxu0 %v672
        %v806 = vpop.f32.mrb[0].mxu0
        %v807 = vadd.f32 %v627, %v806
        %v808 = vpop.f32.mrb[0].mxu0
        %809 = vmatprep.mubr.f32.mxu0 0.0
        %810 = vmatmul.mubr.f32.gmra.mrb[0].mxu0 %v674
        %v811 = vpop.f32.mrb[0].mxu0
        %v812 = vadd.f32 %v632, %v811
        %v813 = vpop.f32.mrb[0].mxu0
        %814 = vmatprep.mubr.f32.mxu0 0.0
        %815 = vmatmul.mubr.f32.gmra.mrb[0].mxu0 %v676
        %v816 = vpop.f32.mrb[0].mxu0
        %v817 = vadd.f32 %v637, %v816
        %v818 = vpop.f32.mrb[0].mxu0
        %819 = vmatprep.mubr.f32.mxu0 0.0
        %820 = vmatmul.mubr.f32.gmra.mrb[0].mxu0 %v678
        %v821 = vpop.f32.mrb[0].mxu0
        %v822 = vadd.f32 %v642, %v821
        %v823 = vpop.f32.mrb[0].mxu0
        %824 = vmatprep.mubr.f32.mxu0 0.0
        %825 = vmatmul.mubr.f32.gmra.mrb[0].mxu0 %v680
        %v826 = vpop.f32.mrb[0].mxu0
        %v827 = vadd.f32 %v647, %v826
        %v828 = vpop.f32.mrb[0].mxu0
        %829 = vdwg.mxu0
        %vm830 = vcmask 1045504
        %v831 = vrot.slane %v328, 2
        %v832 = vrot.slane %v329, 2
        %v833 = vsel %vm830, %v831, %v832
        %v834 = vrot.slane %v330, 2
        %v835 = vsel %vm830, %v832, %v834
        %v836 = vrot.slane %v331, 2
        %v837 = vrot.slane %v332, 2
        %v838 = vsel %vm830, %v836, %v837
        %v839 = vrot.slane %v333, 2
        %v840 = vsel %vm830, %v837, %v839
        %v841 = vrot.slane %v334, 2
        %v842 = vrot.slane %v335, 2
        %v843 = vsel %vm830, %v841, %v842
        %v844 = vrot.slane %v336, 2
        %v845 = vsel %vm830, %v842, %v844
        %v846 = vrot.slane %v337, 2
        %v847 = vrot.slane %v338, 2
        %v848 = vsel %vm830, %v846, %v847
        %v849 = vrot.slane %v339, 2
        %v850 = vsel %vm830, %v847, %v849
        %v851 = vrot.slane %v340, 2
        %v852 = vrot.slane %v341, 2
        %v853 = vsel %vm830, %v851, %v852
        %v854 = vrot.slane %v342, 2
        %v855 = vsel %vm830, %v852, %v854
        %v856 = vrot.slane %v343, 2
        %v857 = vrot.slane %v344, 2
        %v858 = vsel %vm830, %v856, %v857
        %v859 = vrot.slane %v345, 2
        %v860 = vsel %vm830, %v857, %v859
        %v861 = vrot.slane %v346, 2
        %v862 = vrot.slane %v347, 2
        %v863 = vsel %vm830, %v861, %v862
        %v864 = vrot.slane %v348, 2
        %v865 = vsel %vm830, %v862, %v864
        %v866 = vrot.slane %v349, 2
        %v867 = vrot.slane %v350, 2
        %v868 = vsel %vm830, %v866, %v867
        %v869 = vrot.slane %v351, 2
        %v870 = vsel %vm830, %v867, %v869
        %s871 = scalar_lea.vmem %s3, 8
        %v872 = vld [vmem:[%s871] sm:$0xf]
        %v873 = vsel %vm468, %v833, 0
        %v875 = vsel %vm468, %v835, 0
        %v877 = vsel %vm468, %v838, 0
        %v879 = vsel %vm468, %v840, 0
        %v881 = vsel %vm468, %v843, 0
        %v883 = vsel %vm468, %v845, 0
        %v885 = vsel %vm468, %v848, 0
        %v887 = vsel %vm468, %v850, 0
        %v889 = vsel %vm468, %v853, 0
        %v891 = vsel %vm468, %v855, 0
        %v893 = vsel %vm468, %v858, 0
        %v895 = vsel %vm468, %v860, 0
        %v897 = vsel %vm468, %v863, 0
        %v899 = vsel %vm468, %v865, 0
        %v901 = vsel %vm468, %v868, 0
        %v903 = vsel %vm468, %v870, 0
        %v906 = vsel %vm501, %v872, 0
        %908 = vmatprep.subr.mxu0 0.0
        %909 = vmatpush1.msra.mxu0 %v906
        %910 = vmatprep.subr.mxu0 0.0
        %911 = vmatpush1.msra.mxu0 0.0
        %912 = vmatprep.subr.mxu0 0.0
        %913 = vmatpush1.msra.mxu0 0.0
        %914 = vmatprep.subr.mxu0 0.0
        %915 = vmatpush1.msra.mxu0 0.0
        %916 = vmatprep.subr.mxu0 0.0
        %917 = vmatpush1.msra.mxu0 0.0
        %918 = vmatprep.subr.mxu0 0.0
        %919 = vmatpush1.msra.mxu0 0.0
        %920 = vmatprep.subr.mxu0 0.0
        %921 = vmatpush1.msra.mxu0 0.0
        %922 = vmatprep.subr.mxu0 0.0
        %923 = vmatpush1.msra.mxu0 0.0
        %924 = vmatprep.subr.mxu0 0.0
        %925 = vmatpush1.msra.mxu0 0.0
        %926 = vmatprep.subr.mxu0 0.0
        %927 = vmatpush1.msra.mxu0 0.0
        %928 = vmatprep.subr.mxu0 0.0
        %929 = vmatpush1.msra.mxu0 0.0
        %930 = vmatprep.subr.mxu0 0.0
        %931 = vmatpush1.msra.mxu0 0.0
        %932 = vmatprep.subr.mxu0 0.0
        %933 = vmatpush1.msra.mxu0 0.0
        %934 = vmatprep.subr.mxu0 0.0
        %935 = vmatpush1.msra.mxu0 0.0
        %936 = vmatprep.subr.mxu0 0.0
        %937 = vmatpush1.msra.mxu0 0.0
        %938 = vmatprep.subr.mxu0 0.0
        %939 = vmatpush1.msra.mxu0 0.0
        %940 = vmatprep.subr.mxu0 0.0
        %941 = vmatpush1.msra.mxu0 0.0
        %942 = vmatprep.subr.mxu0 0.0
        %943 = vmatpush1.msra.mxu0 0.0
        %944 = vmatprep.subr.mxu0 0.0
        %945 = vmatpush1.msra.mxu0 0.0
        %946 = vmatprep.subr.mxu0 0.0
        %947 = vmatpush1.msra.mxu0 0.0
        %948 = vmatprep.subr.mxu0 0.0
        %949 = vmatpush1.msra.mxu0 0.0
        %950 = vmatprep.subr.mxu0 0.0
        %951 = vmatpush1.msra.mxu0 0.0
        %952 = vmatprep.subr.mxu0 0.0
        %953 = vmatpush1.msra.mxu0 0.0
        %954 = vmatprep.subr.mxu0 0.0
        %955 = vmatpush1.msra.mxu0 0.0
        %956 = vmatprep.subr.mxu0 0.0
        %957 = vmatpush1.msra.mxu0 0.0
        %958 = vmatprep.subr.mxu0 0.0
        %959 = vmatpush1.msra.mxu0 0.0
        %960 = vmatprep.subr.mxu0 0.0
        %961 = vmatpush1.msra.mxu0 0.0
        %962 = vmatprep.subr.mxu0 0.0
        %963 = vmatpush1.msra.mxu0 0.0
        %964 = vmatprep.subr.mxu0 0.0
        %965 = vmatpush1.msra.mxu0 0.0
        %966 = vmatprep.subr.mxu0 0.0
        %967 = vmatpush1.msra.mxu0 0.0
        %968 = vmatprep.subr.mxu0 0.0
        %969 = vmatpush1.msra.mxu0 0.0
        %970 = vmatprep.subr.mxu0 0.0
        %971 = vmatpush1.msra.mxu0 0.0
        %972 = vmatprep.mubr.f32.mxu0 0.0
        %973 = vmatmul.mubr.f32.gmra.mrb[0].mxu0 %v873
        %v974 = vpop.f32.mrb[0].mxu0
        %v975 = vadd.f32 0.0, %v974
        %v976 = vpop.f32.mrb[0].mxu0
        %977 = vmatprep.mubr.f32.mxu0 0.0
        %978 = vmatmul.mubr.f32.gmra.mrb[0].mxu0 %v875
        %v979 = vpop.f32.mrb[0].mxu0
        %v980 = vadd.f32 0.0, %v979
        %v981 = vpop.f32.mrb[0].mxu0
        %982 = vmatprep.mubr.f32.mxu0 0.0
        %983 = vmatmul.mubr.f32.gmra.mrb[0].mxu0 %v877
        %v984 = vpop.f32.mrb[0].mxu0
        %v985 = vadd.f32 0.0, %v984
        %v986 = vpop.f32.mrb[0].mxu0
        %987 = vmatprep.mubr.f32.mxu0 0.0
        %988 = vmatmul.mubr.f32.gmra.mrb[0].mxu0 %v879
        %v989 = vpop.f32.mrb[0].mxu0
        %v990 = vadd.f32 0.0, %v989
        %v991 = vpop.f32.mrb[0].mxu0
        %992 = vmatprep.mubr.f32.mxu0 0.0
        %993 = vmatmul.mubr.f32.gmra.mrb[0].mxu0 %v881
        %v994 = vpop.f32.mrb[0].mxu0
        %v995 = vadd.f32 0.0, %v994
        %v996 = vpop.f32.mrb[0].mxu0
        %997 = vmatprep.mubr.f32.mxu0 0.0
        %998 = vmatmul.mubr.f32.gmra.mrb[0].mxu0 %v883
        %v999 = vpop.f32.mrb[0].mxu0
        %v1000 = vadd.f32 0.0, %v999
        %v1001 = vpop.f32.mrb[0].mxu0
        %1002 = vmatprep.mubr.f32.mxu0 0.0
        %1003 = vmatmul.mubr.f32.gmra.mrb[0].mxu0 %v885
        %v1004 = vpop.f32.mrb[0].mxu0
        %v1005 = vadd.f32 0.0, %v1004
        %v1006 = vpop.f32.mrb[0].mxu0
        %1007 = vmatprep.mubr.f32.mxu0 0.0
        %1008 = vmatmul.mubr.f32.gmra.mrb[0].mxu0 %v887
        %v1009 = vpop.f32.mrb[0].mxu0
        %v1010 = vadd.f32 0.0, %v1009
        %v1011 = vpop.f32.mrb[0].mxu0
        %1012 = vmatprep.mubr.f32.mxu0 0.0
        %1013 = vmatmul.mubr.f32.gmra.mrb[0].mxu0 %v889
        %v1014 = vpop.f32.mrb[0].mxu0
        %v1015 = vadd.f32 0.0, %v1014
        %v1016 = vpop.f32.mrb[0].mxu0
        %1017 = vmatprep.mubr.f32.mxu0 0.0
        %1018 = vmatmul.mubr.f32.gmra.mrb[0].mxu0 %v891
        %v1019 = vpop.f32.mrb[0].mxu0
        %v1020 = vadd.f32 0.0, %v1019
        %v1021 = vpop.f32.mrb[0].mxu0
        %1022 = vmatprep.mubr.f32.mxu0 0.0
        %1023 = vmatmul.mubr.f32.gmra.mrb[0].mxu0 %v893
        %v1024 = vpop.f32.mrb[0].mxu0
        %v1025 = vadd.f32 0.0, %v1024
        %v1026 = vpop.f32.mrb[0].mxu0
        %1027 = vmatprep.mubr.f32.mxu0 0.0
        %1028 = vmatmul.mubr.f32.gmra.mrb[0].mxu0 %v895
        %v1029 = vpop.f32.mrb[0].mxu0
        %v1030 = vadd.f32 0.0, %v1029
        %v1031 = vpop.f32.mrb[0].mxu0
        %1032 = vmatprep.mubr.f32.mxu0 0.0
        %1033 = vmatmul.mubr.f32.gmra.mrb[0].mxu0 %v897
        %v1034 = vpop.f32.mrb[0].mxu0
        %v1035 = vadd.f32 0.0, %v1034
        %v1036 = vpop.f32.mrb[0].mxu0
        %1037 = vmatprep.mubr.f32.mxu0 0.0
        %1038 = vmatmul.mubr.f32.gmra.mrb[0].mxu0 %v899
        %v1039 = vpop.f32.mrb[0].mxu0
        %v1040 = vadd.f32 0.0, %v1039
        %v1041 = vpop.f32.mrb[0].mxu0
        %1042 = vmatprep.mubr.f32.mxu0 0.0
        %1043 = vmatmul.mubr.f32.gmra.mrb[0].mxu0 %v901
        %v1044 = vpop.f32.mrb[0].mxu0
        %v1045 = vadd.f32 0.0, %v1044
        %v1046 = vpop.f32.mrb[0].mxu0
        %1047 = vmatprep.mubr.f32.mxu0 0.0
        %1048 = vmatmul.mubr.f32.gmra.mrb[0].mxu0 %v903
        %v1049 = vpop.f32.mrb[0].mxu0
        %v1050 = vadd.f32 0.0, %v1049
        %v1051 = vpop.f32.mrb[0].mxu0
        %1052 = vdwg.mxu0
        %v1053 = vadd.f32 %v752, %v975
        %v1054 = vadd.f32 %v757, %v980
        %v1055 = vadd.f32 %v762, %v985
        %v1056 = vadd.f32 %v767, %v990
        %v1057 = vadd.f32 %v772, %v995
        %v1058 = vadd.f32 %v777, %v1000
        %v1059 = vadd.f32 %v782, %v1005
        %v1060 = vadd.f32 %v787, %v1010
        %v1061 = vadd.f32 %v792, %v1015
        %v1062 = vadd.f32 %v797, %v1020
        %v1063 = vadd.f32 %v802, %v1025
        %v1064 = vadd.f32 %v807, %v1030
        %v1065 = vadd.f32 %v812, %v1035
        %v1066 = vadd.f32 %v817, %v1040
        %v1067 = vadd.f32 %v822, %v1045
        %v1068 = vadd.f32 %v827, %v1050
        %s1069 = scalar_lea.vmem %s3, 12
        %v1070 = vld [vmem:[%s1069] sm:$0xf]
        %v1072 = vsel %vm468, %v352, 0
        %v1075 = vsel %vm468, %v353, 0
        %v1078 = vsel %vm468, %v355, 0
        %v1081 = vsel %vm468, %v356, 0
        %v1084 = vsel %vm468, %v358, 0
        %v1087 = vsel %vm468, %v359, 0
        %v1090 = vsel %vm468, %v361, 0
        %v1093 = vsel %vm468, %v362, 0
        %v1096 = vsel %vm468, %v364, 0
        %v1099 = vsel %vm468, %v365, 0
        %v1102 = vsel %vm468, %v367, 0
        %v1105 = vsel %vm468, %v368, 0
        %v1108 = vsel %vm468, %v370, 0
        %v1111 = vsel %vm468, %v371, 0
        %v1114 = vsel %vm468, %v373, 0
        %v1117 = vsel %vm468, %v374, 0
        %v1120 = vsel %vm501, %v1070, 0
        %1122 = vmatprep.subr.mxu0 0.0
        %1123 = vmatpush1.msra.mxu0 %v1120
        %1124 = vmatprep.subr.mxu0 0.0
        %1125 = vmatpush1.msra.mxu0 0.0
        %1126 = vmatprep.subr.mxu0 0.0
        %1127 = vmatpush1.msra.mxu0 0.0
        %1128 = vmatprep.subr.mxu0 0.0
        %1129 = vmatpush1.msra.mxu0 0.0
        %1130 = vmatprep.subr.mxu0 0.0
        %1131 = vmatpush1.msra.mxu0 0.0
        %1132 = vmatprep.subr.mxu0 0.0
        %1133 = vmatpush1.msra.mxu0 0.0
        %1134 = vmatprep.subr.mxu0 0.0
        %1135 = vmatpush1.msra.mxu0 0.0
        %1136 = vmatprep.subr.mxu0 0.0
        %1137 = vmatpush1.msra.mxu0 0.0
        %1138 = vmatprep.subr.mxu0 0.0
        %1139 = vmatpush1.msra.mxu0 0.0
        %1140 = vmatprep.subr.mxu0 0.0
        %1141 = vmatpush1.msra.mxu0 0.0
        %1142 = vmatprep.subr.mxu0 0.0
        %1143 = vmatpush1.msra.mxu0 0.0
        %1144 = vmatprep.subr.mxu0 0.0
        %1145 = vmatpush1.msra.mxu0 0.0
        %1146 = vmatprep.subr.mxu0 0.0
        %1147 = vmatpush1.msra.mxu0 0.0
        %1148 = vmatprep.subr.mxu0 0.0
        %1149 = vmatpush1.msra.mxu0 0.0
        %1150 = vmatprep.subr.mxu0 0.0
        %1151 = vmatpush1.msra.mxu0 0.0
        %1152 = vmatprep.subr.mxu0 0.0
        %1153 = vmatpush1.msra.mxu0 0.0
        %1154 = vmatprep.subr.mxu0 0.0
        %1155 = vmatpush1.msra.mxu0 0.0
        %1156 = vmatprep.subr.mxu0 0.0
        %1157 = vmatpush1.msra.mxu0 0.0
        %1158 = vmatprep.subr.mxu0 0.0
        %1159 = vmatpush1.msra.mxu0 0.0
        %1160 = vmatprep.subr.mxu0 0.0
        %1161 = vmatpush1.msra.mxu0 0.0
        %1162 = vmatprep.subr.mxu0 0.0
        %1163 = vmatpush1.msra.mxu0 0.0
        %1164 = vmatprep.subr.mxu0 0.0
        %1165 = vmatpush1.msra.mxu0 0.0
        %1166 = vmatprep.subr.mxu0 0.0
        %1167 = vmatpush1.msra.mxu0 0.0
        %1168 = vmatprep.subr.mxu0 0.0
        %1169 = vmatpush1.msra.mxu0 0.0
        %1170 = vmatprep.subr.mxu0 0.0
        %1171 = vmatpush1.msra.mxu0 0.0
        %1172 = vmatprep.subr.mxu0 0.0
        %1173 = vmatpush1.msra.mxu0 0.0
        %1174 = vmatprep.subr.mxu0 0.0
        %1175 = vmatpush1.msra.mxu0 0.0
        %1176 = vmatprep.subr.mxu0 0.0
        %1177 = vmatpush1.msra.mxu0 0.0
        %1178 = vmatprep.subr.mxu0 0.0
        %1179 = vmatpush1.msra.mxu0 0.0
        %1180 = vmatprep.subr.mxu0 0.0
        %1181 = vmatpush1.msra.mxu0 0.0
        %1182 = vmatprep.subr.mxu0 0.0
        %1183 = vmatpush1.msra.mxu0 0.0
        %1184 = vmatprep.subr.mxu0 0.0
        %1185 = vmatpush1.msra.mxu0 0.0
        %1186 = vmatprep.mubr.f32.mxu0 0.0
        %1187 = vmatmul.mubr.f32.gmra.mrb[0].mxu0 %v1072
        %v1188 = vpop.f32.mrb[0].mxu0
        %v1189 = vadd.f32 0.0, %v1188
        %v1190 = vpop.f32.mrb[0].mxu0
        %1191 = vmatprep.mubr.f32.mxu0 0.0
        %1192 = vmatmul.mubr.f32.gmra.mrb[0].mxu0 %v1075
        %v1193 = vpop.f32.mrb[0].mxu0
        %v1194 = vadd.f32 0.0, %v1193
        %v1195 = vpop.f32.mrb[0].mxu0
        %1196 = vmatprep.mubr.f32.mxu0 0.0
        %1197 = vmatmul.mubr.f32.gmra.mrb[0].mxu0 %v1078
        %v1198 = vpop.f32.mrb[0].mxu0
        %v1199 = vadd.f32 0.0, %v1198
        %v1200 = vpop.f32.mrb[0].mxu0
        %1201 = vmatprep.mubr.f32.mxu0 0.0
        %1202 = vmatmul.mubr.f32.gmra.mrb[0].mxu0 %v1081
        %v1203 = vpop.f32.mrb[0].mxu0
        %v1204 = vadd.f32 0.0, %v1203
        %v1205 = vpop.f32.mrb[0].mxu0
        %1206 = vmatprep.mubr.f32.mxu0 0.0
        %1207 = vmatmul.mubr.f32.gmra.mrb[0].mxu0 %v1084
        %v1208 = vpop.f32.mrb[0].mxu0
        %v1209 = vadd.f32 0.0, %v1208
        %v1210 = vpop.f32.mrb[0].mxu0
        %1211 = vmatprep.mubr.f32.mxu0 0.0
        %1212 = vmatmul.mubr.f32.gmra.mrb[0].mxu0 %v1087
        %v1213 = vpop.f32.mrb[0].mxu0
        %v1214 = vadd.f32 0.0, %v1213
        %v1215 = vpop.f32.mrb[0].mxu0
        %1216 = vmatprep.mubr.f32.mxu0 0.0
        %1217 = vmatmul.mubr.f32.gmra.mrb[0].mxu0 %v1090
        %v1218 = vpop.f32.mrb[0].mxu0
        %v1219 = vadd.f32 0.0, %v1218
        %v1220 = vpop.f32.mrb[0].mxu0
        %1221 = vmatprep.mubr.f32.mxu0 0.0
        %1222 = vmatmul.mubr.f32.gmra.mrb[0].mxu0 %v1093
        %v1223 = vpop.f32.mrb[0].mxu0
        %v1224 = vadd.f32 0.0, %v1223
        %v1225 = vpop.f32.mrb[0].mxu0
        %1226 = vmatprep.mubr.f32.mxu0 0.0
        %1227 = vmatmul.mubr.f32.gmra.mrb[0].mxu0 %v1096
        %v1228 = vpop.f32.mrb[0].mxu0
        %v1229 = vadd.f32 0.0, %v1228
        %v1230 = vpop.f32.mrb[0].mxu0
        %1231 = vmatprep.mubr.f32.mxu0 0.0
        %1232 = vmatmul.mubr.f32.gmra.mrb[0].mxu0 %v1099
        %v1233 = vpop.f32.mrb[0].mxu0
        %v1234 = vadd.f32 0.0, %v1233
        %v1235 = vpop.f32.mrb[0].mxu0
        %1236 = vmatprep.mubr.f32.mxu0 0.0
        %1237 = vmatmul.mubr.f32.gmra.mrb[0].mxu0 %v1102
        %v1238 = vpop.f32.mrb[0].mxu0
        %v1239 = vadd.f32 0.0, %v1238
        %v1240 = vpop.f32.mrb[0].mxu0
        %1241 = vmatprep.mubr.f32.mxu0 0.0
        %1242 = vmatmul.mubr.f32.gmra.mrb[0].mxu0 %v1105
        %v1243 = vpop.f32.mrb[0].mxu0
        %v1244 = vadd.f32 0.0, %v1243
        %v1245 = vpop.f32.mrb[0].mxu0
        %1246 = vmatprep.mubr.f32.mxu0 0.0
        %1247 = vmatmul.mubr.f32.gmra.mrb[0].mxu0 %v1108
        %v1248 = vpop.f32.mrb[0].mxu0
        %v1249 = vadd.f32 0.0, %v1248
        %v1250 = vpop.f32.mrb[0].mxu0
        %1251 = vmatprep.mubr.f32.mxu0 0.0
        %1252 = vmatmul.mubr.f32.gmra.mrb[0].mxu0 %v1111
        %v1253 = vpop.f32.mrb[0].mxu0
        %v1254 = vadd.f32 0.0, %v1253
        %v1255 = vpop.f32.mrb[0].mxu0
        %1256 = vmatprep.mubr.f32.mxu0 0.0
        %1257 = vmatmul.mubr.f32.gmra.mrb[0].mxu0 %v1114
        %v1258 = vpop.f32.mrb[0].mxu0
        %v1259 = vadd.f32 0.0, %v1258
        %v1260 = vpop.f32.mrb[0].mxu0
        %1261 = vmatprep.mubr.f32.mxu0 0.0
        %1262 = vmatmul.mubr.f32.gmra.mrb[0].mxu0 %v1117
        %v1263 = vpop.f32.mrb[0].mxu0
        %v1264 = vadd.f32 0.0, %v1263
        %v1265 = vpop.f32.mrb[0].mxu0
        %1266 = vdwg.mxu0
        %v1267 = vadd.f32 %v1053, %v1189
        %v1268 = vadd.f32 %v1054, %v1194
        %v1269 = vadd.f32 %v1055, %v1199
        %v1270 = vadd.f32 %v1056, %v1204
        %v1271 = vadd.f32 %v1057, %v1209
        %v1272 = vadd.f32 %v1058, %v1214
        %v1273 = vadd.f32 %v1059, %v1219
        %v1274 = vadd.f32 %v1060, %v1224
        %v1275 = vadd.f32 %v1061, %v1229
        %v1276 = vadd.f32 %v1062, %v1234
        %v1277 = vadd.f32 %v1063, %v1239
        %v1278 = vadd.f32 %v1064, %v1244
        %v1279 = vadd.f32 %v1065, %v1249
        %v1280 = vadd.f32 %v1066, %v1254
        %v1281 = vadd.f32 %v1067, %v1259
        %v1282 = vadd.f32 %v1068, %v1264
        %v1291 = vrot.slane %v352, 1
        %v1292 = vrot.slane %v353, 1
        %v1293 = vsel %vm425, %v1291, %v1292
        %v1294 = vrot.slane %v354, 1
        %v1295 = vsel %vm425, %v1292, %v1294
        %v1296 = vrot.slane %v355, 1
        %v1297 = vrot.slane %v356, 1
        %v1298 = vsel %vm425, %v1296, %v1297
        %v1299 = vrot.slane %v357, 1
        %v1300 = vsel %vm425, %v1297, %v1299
        %v1301 = vrot.slane %v358, 1
        %v1302 = vrot.slane %v359, 1
        %v1303 = vsel %vm425, %v1301, %v1302
        %v1304 = vrot.slane %v360, 1
        %v1305 = vsel %vm425, %v1302, %v1304
        %v1306 = vrot.slane %v361, 1
        %v1307 = vrot.slane %v362, 1
        %v1308 = vsel %vm425, %v1306, %v1307
        %v1309 = vrot.slane %v363, 1
        %v1310 = vsel %vm425, %v1307, %v1309
        %v1311 = vrot.slane %v364, 1
        %v1312 = vrot.slane %v365, 1
        %v1313 = vsel %vm425, %v1311, %v1312
        %v1314 = vrot.slane %v366, 1
        %v1315 = vsel %vm425, %v1312, %v1314
        %v1316 = vrot.slane %v367, 1
        %v1317 = vrot.slane %v368, 1
        %v1318 = vsel %vm425, %v1316, %v1317
        %v1319 = vrot.slane %v369, 1
        %v1320 = vsel %vm425, %v1317, %v1319
        %v1321 = vrot.slane %v370, 1
        %v1322 = vrot.slane %v371, 1
        %v1323 = vsel %vm425, %v1321, %v1322
        %v1324 = vrot.slane %v372, 1
        %v1325 = vsel %vm425, %v1322, %v1324
        %v1326 = vrot.slane %v373, 1
        %v1327 = vrot.slane %v374, 1
        %v1328 = vsel %vm425, %v1326, %v1327
        %v1329 = vrot.slane %v375, 1
        %v1330 = vsel %vm425, %v1327, %v1329
        %s1331 = scalar_lea.vmem %s3, 16
        %v1332 = vld [vmem:[%s1331] sm:$0xf]
        %v1333 = vsel %vm468, %v1293, 0
        %v1335 = vsel %vm468, %v1295, 0
        %v1337 = vsel %vm468, %v1298, 0
        %v1339 = vsel %vm468, %v1300, 0
        %v1341 = vsel %vm468, %v1303, 0
        %v1343 = vsel %vm468, %v1305, 0
        %v1345 = vsel %vm468, %v1308, 0
        %v1347 = vsel %vm468, %v1310, 0
        %v1349 = vsel %vm468, %v1313, 0
        %v1351 = vsel %vm468, %v1315, 0
        %v1353 = vsel %vm468, %v1318, 0
        %v1355 = vsel %vm468, %v1320, 0
        %v1357 = vsel %vm468, %v1323, 0
        %v1359 = vsel %vm468, %v1325, 0
        %v1361 = vsel %vm468, %v1328, 0
        %v1363 = vsel %vm468, %v1330, 0
        %v1366 = vsel %vm501, %v1332, 0
        %1368 = vmatprep.subr.mxu0 0.0
        %1369 = vmatpush1.msra.mxu0 %v1366
        %1370 = vmatprep.subr.mxu0 0.0
        %1371 = vmatpush1.msra.mxu0 0.0
        %1372 = vmatprep.subr.mxu0 0.0
        %1373 = vmatpush1.msra.mxu0 0.0
        %1374 = vmatprep.subr.mxu0 0.0
        %1375 = vmatpush1.msra.mxu0 0.0
        %1376 = vmatprep.subr.mxu0 0.0
        %1377 = vmatpush1.msra.mxu0 0.0
        %1378 = vmatprep.subr.mxu0 0.0
        %1379 = vmatpush1.msra.mxu0 0.0
        %1380 = vmatprep.subr.mxu0 0.0
        %1381 = vmatpush1.msra.mxu0 0.0
        %1382 = vmatprep.subr.mxu0 0.0
        %1383 = vmatpush1.msra.mxu0 0.0
        %1384 = vmatprep.subr.mxu0 0.0
        %1385 = vmatpush1.msra.mxu0 0.0
        %1386 = vmatprep.subr.mxu0 0.0
        %1387 = vmatpush1.msra.mxu0 0.0
        %1388 = vmatprep.subr.mxu0 0.0
        %1389 = vmatpush1.msra.mxu0 0.0
        %1390 = vmatprep.subr.mxu0 0.0
        %1391 = vmatpush1.msra.mxu0 0.0
        %1392 = vmatprep.subr.mxu0 0.0
        %1393 = vmatpush1.msra.mxu0 0.0
        %1394 = vmatprep.subr.mxu0 0.0
        %1395 = vmatpush1.msra.mxu0 0.0
        %1396 = vmatprep.subr.mxu0 0.0
        %1397 = vmatpush1.msra.mxu0 0.0
        %1398 = vmatprep.subr.mxu0 0.0
        %1399 = vmatpush1.msra.mxu0 0.0
        %1400 = vmatprep.subr.mxu0 0.0
        %1401 = vmatpush1.msra.mxu0 0.0
        %1402 = vmatprep.subr.mxu0 0.0
        %1403 = vmatpush1.msra.mxu0 0.0
        %1404 = vmatprep.subr.mxu0 0.0
        %1405 = vmatpush1.msra.mxu0 0.0
        %1406 = vmatprep.subr.mxu0 0.0
        %1407 = vmatpush1.msra.mxu0 0.0
        %1408 = vmatprep.subr.mxu0 0.0
        %1409 = vmatpush1.msra.mxu0 0.0
        %1410 = vmatprep.subr.mxu0 0.0
        %1411 = vmatpush1.msra.mxu0 0.0
        %1412 = vmatprep.subr.mxu0 0.0
        %1413 = vmatpush1.msra.mxu0 0.0
        %1414 = vmatprep.subr.mxu0 0.0
        %1415 = vmatpush1.msra.mxu0 0.0
        %1416 = vmatprep.subr.mxu0 0.0
        %1417 = vmatpush1.msra.mxu0 0.0
        %1418 = vmatprep.subr.mxu0 0.0
        %1419 = vmatpush1.msra.mxu0 0.0
        %1420 = vmatprep.subr.mxu0 0.0
        %1421 = vmatpush1.msra.mxu0 0.0
        %1422 = vmatprep.subr.mxu0 0.0
        %1423 = vmatpush1.msra.mxu0 0.0
        %1424 = vmatprep.subr.mxu0 0.0
        %1425 = vmatpush1.msra.mxu0 0.0
        %1426 = vmatprep.subr.mxu0 0.0
        %1427 = vmatpush1.msra.mxu0 0.0
        %1428 = vmatprep.subr.mxu0 0.0
        %1429 = vmatpush1.msra.mxu0 0.0
        %1430 = vmatprep.subr.mxu0 0.0
        %1431 = vmatpush1.msra.mxu0 0.0
        %1432 = vmatprep.mubr.f32.mxu0 0.0
        %1433 = vmatmul.mubr.f32.gmra.mrb[0].mxu0 %v1333
        %v1434 = vpop.f32.mrb[0].mxu0
        %v1435 = vadd.f32 0.0, %v1434
        %v1436 = vpop.f32.mrb[0].mxu0
        %1437 = vmatprep.mubr.f32.mxu0 0.0
        %1438 = vmatmul.mubr.f32.gmra.mrb[0].mxu0 %v1335
        %v1439 = vpop.f32.mrb[0].mxu0
        %v1440 = vadd.f32 0.0, %v1439
        %v1441 = vpop.f32.mrb[0].mxu0
        %1442 = vmatprep.mubr.f32.mxu0 0.0
        %1443 = vmatmul.mubr.f32.gmra.mrb[0].mxu0 %v1337
        %v1444 = vpop.f32.mrb[0].mxu0
        %v1445 = vadd.f32 0.0, %v1444
        %v1446 = vpop.f32.mrb[0].mxu0
        %1447 = vmatprep.mubr.f32.mxu0 0.0
        %1448 = vmatmul.mubr.f32.gmra.mrb[0].mxu0 %v1339
        %v1449 = vpop.f32.mrb[0].mxu0
        %v1450 = vadd.f32 0.0, %v1449
        %v1451 = vpop.f32.mrb[0].mxu0
        %1452 = vmatprep.mubr.f32.mxu0 0.0
        %1453 = vmatmul.mubr.f32.gmra.mrb[0].mxu0 %v1341
        %v1454 = vpop.f32.mrb[0].mxu0
        %v1455 = vadd.f32 0.0, %v1454
        %v1456 = vpop.f32.mrb[0].mxu0
        %1457 = vmatprep.mubr.f32.mxu0 0.0
        %1458 = vmatmul.mubr.f32.gmra.mrb[0].mxu0 %v1343
        %v1459 = vpop.f32.mrb[0].mxu0
        %v1460 = vadd.f32 0.0, %v1459
        %v1461 = vpop.f32.mrb[0].mxu0
        %1462 = vmatprep.mubr.f32.mxu0 0.0
        %1463 = vmatmul.mubr.f32.gmra.mrb[0].mxu0 %v1345
        %v1464 = vpop.f32.mrb[0].mxu0
        %v1465 = vadd.f32 0.0, %v1464
        %v1466 = vpop.f32.mrb[0].mxu0
        %1467 = vmatprep.mubr.f32.mxu0 0.0
        %1468 = vmatmul.mubr.f32.gmra.mrb[0].mxu0 %v1347
        %v1469 = vpop.f32.mrb[0].mxu0
        %v1470 = vadd.f32 0.0, %v1469
        %v1471 = vpop.f32.mrb[0].mxu0
        %1472 = vmatprep.mubr.f32.mxu0 0.0
        %1473 = vmatmul.mubr.f32.gmra.mrb[0].mxu0 %v1349
        %v1474 = vpop.f32.mrb[0].mxu0
        %v1475 = vadd.f32 0.0, %v1474
        %v1476 = vpop.f32.mrb[0].mxu0
        %1477 = vmatprep.mubr.f32.mxu0 0.0
        %1478 = vmatmul.mubr.f32.gmra.mrb[0].mxu0 %v1351
        %v1479 = vpop.f32.mrb[0].mxu0
        %v1480 = vadd.f32 0.0, %v1479
        %v1481 = vpop.f32.mrb[0].mxu0
        %1482 = vmatprep.mubr.f32.mxu0 0.0
        %1483 = vmatmul.mubr.f32.gmra.mrb[0].mxu0 %v1353
        %v1484 = vpop.f32.mrb[0].mxu0
        %v1485 = vadd.f32 0.0, %v1484
        %v1486 = vpop.f32.mrb[0].mxu0
        %1487 = vmatprep.mubr.f32.mxu0 0.0
        %1488 = vmatmul.mubr.f32.gmra.mrb[0].mxu0 %v1355
        %v1489 = vpop.f32.mrb[0].mxu0
        %v1490 = vadd.f32 0.0, %v1489
        %v1491 = vpop.f32.mrb[0].mxu0
        %1492 = vmatprep.mubr.f32.mxu0 0.0
        %1493 = vmatmul.mubr.f32.gmra.mrb[0].mxu0 %v1357
        %v1494 = vpop.f32.mrb[0].mxu0
        %v1495 = vadd.f32 0.0, %v1494
        %v1496 = vpop.f32.mrb[0].mxu0
        %1497 = vmatprep.mubr.f32.mxu0 0.0
        %1498 = vmatmul.mubr.f32.gmra.mrb[0].mxu0 %v1359
        %v1499 = vpop.f32.mrb[0].mxu0
        %v1500 = vadd.f32 0.0, %v1499
        %v1501 = vpop.f32.mrb[0].mxu0
        %1502 = vmatprep.mubr.f32.mxu0 0.0
        %1503 = vmatmul.mubr.f32.gmra.mrb[0].mxu0 %v1361
        %v1504 = vpop.f32.mrb[0].mxu0
        %v1505 = vadd.f32 0.0, %v1504
        %v1506 = vpop.f32.mrb[0].mxu0
        %1507 = vmatprep.mubr.f32.mxu0 0.0
        %1508 = vmatmul.mubr.f32.gmra.mrb[0].mxu0 %v1363
        %v1509 = vpop.f32.mrb[0].mxu0
        %v1510 = vadd.f32 0.0, %v1509
        %v1511 = vpop.f32.mrb[0].mxu0
        %1512 = vdwg.mxu0
        %v1513 = vadd.f32 %v1267, %v1435
        %v1514 = vadd.f32 %v1268, %v1440
        %v1515 = vadd.f32 %v1269, %v1445
        %v1516 = vadd.f32 %v1270, %v1450
        %v1517 = vadd.f32 %v1271, %v1455
        %v1518 = vadd.f32 %v1272, %v1460
        %v1519 = vadd.f32 %v1273, %v1465
        %v1520 = vadd.f32 %v1274, %v1470
        %v1521 = vadd.f32 %v1275, %v1475
        %v1522 = vadd.f32 %v1276, %v1480
        %v1523 = vadd.f32 %v1277, %v1485
        %v1524 = vadd.f32 %v1278, %v1490
        %v1525 = vadd.f32 %v1279, %v1495
        %v1526 = vadd.f32 %v1280, %v1500
        %v1527 = vadd.f32 %v1281, %v1505
        %v1528 = vadd.f32 %v1282, %v1510
        %v1529 = vrot.slane %v352, 2
        %v1530 = vrot.slane %v353, 2
        %v1531 = vsel %vm830, %v1529, %v1530
        %v1532 = vrot.slane %v354, 2
        %v1533 = vsel %vm830, %v1530, %v1532
        %v1534 = vrot.slane %v355, 2
        %v1535 = vrot.slane %v356, 2
        %v1536 = vsel %vm830, %v1534, %v1535
        %v1537 = vrot.slane %v357, 2
        %v1538 = vsel %vm830, %v1535, %v1537
        %v1539 = vrot.slane %v358, 2
        %v1540 = vrot.slane %v359, 2
        %v1541 = vsel %vm830, %v1539, %v1540
        %v1542 = vrot.slane %v360, 2
        %v1543 = vsel %vm830, %v1540, %v1542
        %v1544 = vrot.slane %v361, 2
        %v1545 = vrot.slane %v362, 2
        %v1546 = vsel %vm830, %v1544, %v1545
        %v1547 = vrot.slane %v363, 2
        %v1548 = vsel %vm830, %v1545, %v1547
        %v1549 = vrot.slane %v364, 2
        %v1550 = vrot.slane %v365, 2
        %v1551 = vsel %vm830, %v1549, %v1550
        %v1552 = vrot.slane %v366, 2
        %v1553 = vsel %vm830, %v1550, %v1552
        %v1554 = vrot.slane %v367, 2
        %v1555 = vrot.slane %v368, 2
        %v1556 = vsel %vm830, %v1554, %v1555
        %v1557 = vrot.slane %v369, 2
        %v1558 = vsel %vm830, %v1555, %v1557
        %v1559 = vrot.slane %v370, 2
        %v1560 = vrot.slane %v371, 2
        %v1561 = vsel %vm830, %v1559, %v1560
        %v1562 = vrot.slane %v372, 2
        %v1563 = vsel %vm830, %v1560, %v1562
        %v1564 = vrot.slane %v373, 2
        %v1565 = vrot.slane %v374, 2
        %v1566 = vsel %vm830, %v1564, %v1565
        %v1567 = vrot.slane %v375, 2
        %v1568 = vsel %vm830, %v1565, %v1567
        %s1569 = scalar_lea.vmem %s3, 20
        %v1570 = vld [vmem:[%s1569] sm:$0xf]
        %v1571 = vsel %vm468, %v1531, 0
        %v1573 = vsel %vm468, %v1533, 0
        %v1575 = vsel %vm468, %v1536, 0
        %v1577 = vsel %vm468, %v1538, 0
        %v1579 = vsel %vm468, %v1541, 0
        %v1581 = vsel %vm468, %v1543, 0
        %v1583 = vsel %vm468, %v1546, 0
        %v1585 = vsel %vm468, %v1548, 0
        %v1587 = vsel %vm468, %v1551, 0
        %v1589 = vsel %vm468, %v1553, 0
        %v1591 = vsel %vm468, %v1556, 0
        %v1593 = vsel %vm468, %v1558, 0
        %v1595 = vsel %vm468, %v1561, 0
        %v1597 = vsel %vm468, %v1563, 0
        %v1599 = vsel %vm468, %v1566, 0
        %v1601 = vsel %vm468, %v1568, 0
        %v1604 = vsel %vm501, %v1570, 0
        %1606 = vmatprep.subr.mxu0 0.0
        %1607 = vmatpush1.msra.mxu0 %v1604
        %1608 = vmatprep.subr.mxu0 0.0
        %1609 = vmatpush1.msra.mxu0 0.0
        %1610 = vmatprep.subr.mxu0 0.0
        %1611 = vmatpush1.msra.mxu0 0.0
        %1612 = vmatprep.subr.mxu0 0.0
        %1613 = vmatpush1.msra.mxu0 0.0
        %1614 = vmatprep.subr.mxu0 0.0
        %1615 = vmatpush1.msra.mxu0 0.0
        %1616 = vmatprep.subr.mxu0 0.0
        %1617 = vmatpush1.msra.mxu0 0.0
        %1618 = vmatprep.subr.mxu0 0.0
        %1619 = vmatpush1.msra.mxu0 0.0
        %1620 = vmatprep.subr.mxu0 0.0
        %1621 = vmatpush1.msra.mxu0 0.0
        %1622 = vmatprep.subr.mxu0 0.0
        %1623 = vmatpush1.msra.mxu0 0.0
        %1624 = vmatprep.subr.mxu0 0.0
        %1625 = vmatpush1.msra.mxu0 0.0
        %1626 = vmatprep.subr.mxu0 0.0
        %1627 = vmatpush1.msra.mxu0 0.0
        %1628 = vmatprep.subr.mxu0 0.0
        %1629 = vmatpush1.msra.mxu0 0.0
        %1630 = vmatprep.subr.mxu0 0.0
        %1631 = vmatpush1.msra.mxu0 0.0
        %1632 = vmatprep.subr.mxu0 0.0
        %1633 = vmatpush1.msra.mxu0 0.0
        %1634 = vmatprep.subr.mxu0 0.0
        %1635 = vmatpush1.msra.mxu0 0.0
        %1636 = vmatprep.subr.mxu0 0.0
        %1637 = vmatpush1.msra.mxu0 0.0
        %1638 = vmatprep.subr.mxu0 0.0
        %1639 = vmatpush1.msra.mxu0 0.0
        %1640 = vmatprep.subr.mxu0 0.0
        %1641 = vmatpush1.msra.mxu0 0.0
        %1642 = vmatprep.subr.mxu0 0.0
        %1643 = vmatpush1.msra.mxu0 0.0
        %1644 = vmatprep.subr.mxu0 0.0
        %1645 = vmatpush1.msra.mxu0 0.0
        %1646 = vmatprep.subr.mxu0 0.0
        %1647 = vmatpush1.msra.mxu0 0.0
        %1648 = vmatprep.subr.mxu0 0.0
        %1649 = vmatpush1.msra.mxu0 0.0
        %1650 = vmatprep.subr.mxu0 0.0
        %1651 = vmatpush1.msra.mxu0 0.0
        %1652 = vmatprep.subr.mxu0 0.0
        %1653 = vmatpush1.msra.mxu0 0.0
        %1654 = vmatprep.subr.mxu0 0.0
        %1655 = vmatpush1.msra.mxu0 0.0
        %1656 = vmatprep.subr.mxu0 0.0
        %1657 = vmatpush1.msra.mxu0 0.0
        %1658 = vmatprep.subr.mxu0 0.0
        %1659 = vmatpush1.msra.mxu0 0.0
        %1660 = vmatprep.subr.mxu0 0.0
        %1661 = vmatpush1.msra.mxu0 0.0
        %1662 = vmatprep.subr.mxu0 0.0
        %1663 = vmatpush1.msra.mxu0 0.0
        %1664 = vmatprep.subr.mxu0 0.0
        %1665 = vmatpush1.msra.mxu0 0.0
        %1666 = vmatprep.subr.mxu0 0.0
        %1667 = vmatpush1.msra.mxu0 0.0
        %1668 = vmatprep.subr.mxu0 0.0
        %1669 = vmatpush1.msra.mxu0 0.0
        %1670 = vmatprep.mubr.f32.mxu0 0.0
        %1671 = vmatmul.mubr.f32.gmra.mrb[0].mxu0 %v1571
        %v1672 = vpop.f32.mrb[0].mxu0
        %v1673 = vadd.f32 0.0, %v1672
        %v1674 = vpop.f32.mrb[0].mxu0
        %1675 = vmatprep.mubr.f32.mxu0 0.0
        %1676 = vmatmul.mubr.f32.gmra.mrb[0].mxu0 %v1573
        %v1677 = vpop.f32.mrb[0].mxu0
        %v1678 = vadd.f32 0.0, %v1677
        %v1679 = vpop.f32.mrb[0].mxu0
        %1680 = vmatprep.mubr.f32.mxu0 0.0
        %1681 = vmatmul.mubr.f32.gmra.mrb[0].mxu0 %v1575
        %v1682 = vpop.f32.mrb[0].mxu0
        %v1683 = vadd.f32 0.0, %v1682
        %v1684 = vpop.f32.mrb[0].mxu0
        %1685 = vmatprep.mubr.f32.mxu0 0.0
        %1686 = vmatmul.mubr.f32.gmra.mrb[0].mxu0 %v1577
        %v1687 = vpop.f32.mrb[0].mxu0
        %v1688 = vadd.f32 0.0, %v1687
        %v1689 = vpop.f32.mrb[0].mxu0
        %1690 = vmatprep.mubr.f32.mxu0 0.0
        %1691 = vmatmul.mubr.f32.gmra.mrb[0].mxu0 %v1579
        %v1692 = vpop.f32.mrb[0].mxu0
        %v1693 = vadd.f32 0.0, %v1692
        %v1694 = vpop.f32.mrb[0].mxu0
        %1695 = vmatprep.mubr.f32.mxu0 0.0
        %1696 = vmatmul.mubr.f32.gmra.mrb[0].mxu0 %v1581
        %v1697 = vpop.f32.mrb[0].mxu0
        %v1698 = vadd.f32 0.0, %v1697
        %v1699 = vpop.f32.mrb[0].mxu0
        %1700 = vmatprep.mubr.f32.mxu0 0.0
        %1701 = vmatmul.mubr.f32.gmra.mrb[0].mxu0 %v1583
        %v1702 = vpop.f32.mrb[0].mxu0
        %v1703 = vadd.f32 0.0, %v1702
        %v1704 = vpop.f32.mrb[0].mxu0
        %1705 = vmatprep.mubr.f32.mxu0 0.0
        %1706 = vmatmul.mubr.f32.gmra.mrb[0].mxu0 %v1585
        %v1707 = vpop.f32.mrb[0].mxu0
        %v1708 = vadd.f32 0.0, %v1707
        %v1709 = vpop.f32.mrb[0].mxu0
        %1710 = vmatprep.mubr.f32.mxu0 0.0
        %1711 = vmatmul.mubr.f32.gmra.mrb[0].mxu0 %v1587
        %v1712 = vpop.f32.mrb[0].mxu0
        %v1713 = vadd.f32 0.0, %v1712
        %v1714 = vpop.f32.mrb[0].mxu0
        %1715 = vmatprep.mubr.f32.mxu0 0.0
        %1716 = vmatmul.mubr.f32.gmra.mrb[0].mxu0 %v1589
        %v1717 = vpop.f32.mrb[0].mxu0
        %v1718 = vadd.f32 0.0, %v1717
        %v1719 = vpop.f32.mrb[0].mxu0
        %1720 = vmatprep.mubr.f32.mxu0 0.0
        %1721 = vmatmul.mubr.f32.gmra.mrb[0].mxu0 %v1591
        %v1722 = vpop.f32.mrb[0].mxu0
        %v1723 = vadd.f32 0.0, %v1722
        %v1724 = vpop.f32.mrb[0].mxu0
        %1725 = vmatprep.mubr.f32.mxu0 0.0
        %1726 = vmatmul.mubr.f32.gmra.mrb[0].mxu0 %v1593
        %v1727 = vpop.f32.mrb[0].mxu0
        %v1728 = vadd.f32 0.0, %v1727
        %v1729 = vpop.f32.mrb[0].mxu0
        %1730 = vmatprep.mubr.f32.mxu0 0.0
        %1731 = vmatmul.mubr.f32.gmra.mrb[0].mxu0 %v1595
        %v1732 = vpop.f32.mrb[0].mxu0
        %v1733 = vadd.f32 0.0, %v1732
        %v1734 = vpop.f32.mrb[0].mxu0
        %1735 = vmatprep.mubr.f32.mxu0 0.0
        %1736 = vmatmul.mubr.f32.gmra.mrb[0].mxu0 %v1597
        %v1737 = vpop.f32.mrb[0].mxu0
        %v1738 = vadd.f32 0.0, %v1737
        %v1739 = vpop.f32.mrb[0].mxu0
        %1740 = vmatprep.mubr.f32.mxu0 0.0
        %1741 = vmatmul.mubr.f32.gmra.mrb[0].mxu0 %v1599
        %v1742 = vpop.f32.mrb[0].mxu0
        %v1743 = vadd.f32 0.0, %v1742
        %v1744 = vpop.f32.mrb[0].mxu0
        %1745 = vmatprep.mubr.f32.mxu0 0.0
        %1746 = vmatmul.mubr.f32.gmra.mrb[0].mxu0 %v1601
        %v1747 = vpop.f32.mrb[0].mxu0
        %v1748 = vadd.f32 0.0, %v1747
        %v1749 = vpop.f32.mrb[0].mxu0
        %1750 = vdwg.mxu0
        %v1751 = vadd.f32 %v1513, %v1673
        %v1752 = vadd.f32 %v1514, %v1678
        %v1753 = vadd.f32 %v1515, %v1683
        %v1754 = vadd.f32 %v1516, %v1688
        %v1755 = vadd.f32 %v1517, %v1693
        %v1756 = vadd.f32 %v1518, %v1698
        %v1757 = vadd.f32 %v1519, %v1703
        %v1758 = vadd.f32 %v1520, %v1708
        %v1759 = vadd.f32 %v1521, %v1713
        %v1760 = vadd.f32 %v1522, %v1718
        %v1761 = vadd.f32 %v1523, %v1723
        %v1762 = vadd.f32 %v1524, %v1728
        %v1763 = vadd.f32 %v1525, %v1733
        %v1764 = vadd.f32 %v1526, %v1738
        %v1765 = vadd.f32 %v1527, %v1743
        %v1766 = vadd.f32 %v1528, %v1748
        %s1767 = scalar_lea.vmem %s3, 24
        %v1768 = vld [vmem:[%s1767] sm:$0xf]
        %v1770 = vsel %vm468, %v376, 0
        %v1773 = vsel %vm468, %v377, 0
        %v1776 = vsel %vm468, %v379, 0
        %v1779 = vsel %vm468, %v380, 0
        %v1782 = vsel %vm468, %v382, 0
        %v1785 = vsel %vm468, %v383, 0
        %v1788 = vsel %vm468, %v385, 0
        %v1791 = vsel %vm468, %v386, 0
        %v1794 = vsel %vm468, %v388, 0
        %v1797 = vsel %vm468, %v389, 0
        %v1800 = vsel %vm468, %v391, 0
        %v1803 = vsel %vm468, %v392, 0
        %v1806 = vsel %vm468, %v394, 0
        %v1809 = vsel %vm468, %v395, 0
        %v1812 = vsel %vm468, %v397, 0
        %v1815 = vsel %vm468, %v398, 0
        %v1818 = vsel %vm501, %v1768, 0
        %1820 = vmatprep.subr.mxu0 0.0
        %1821 = vmatpush1.msra.mxu0 %v1818
        %1822 = vmatprep.subr.mxu0 0.0
        %1823 = vmatpush1.msra.mxu0 0.0
        %1824 = vmatprep.subr.mxu0 0.0
        %1825 = vmatpush1.msra.mxu0 0.0
        %1826 = vmatprep.subr.mxu0 0.0
        %1827 = vmatpush1.msra.mxu0 0.0
        %1828 = vmatprep.subr.mxu0 0.0
        %1829 = vmatpush1.msra.mxu0 0.0
        %1830 = vmatprep.subr.mxu0 0.0
        %1831 = vmatpush1.msra.mxu0 0.0
        %1832 = vmatprep.subr.mxu0 0.0
        %1833 = vmatpush1.msra.mxu0 0.0
        %1834 = vmatprep.subr.mxu0 0.0
        %1835 = vmatpush1.msra.mxu0 0.0
        %1836 = vmatprep.subr.mxu0 0.0
        %1837 = vmatpush1.msra.mxu0 0.0
        %1838 = vmatprep.subr.mxu0 0.0
        %1839 = vmatpush1.msra.mxu0 0.0
        %1840 = vmatprep.subr.mxu0 0.0
        %1841 = vmatpush1.msra.mxu0 0.0
        %1842 = vmatprep.subr.mxu0 0.0
        %1843 = vmatpush1.msra.mxu0 0.0
        %1844 = vmatprep.subr.mxu0 0.0
        %1845 = vmatpush1.msra.mxu0 0.0
        %1846 = vmatprep.subr.mxu0 0.0
        %1847 = vmatpush1.msra.mxu0 0.0
        %1848 = vmatprep.subr.mxu0 0.0
        %1849 = vmatpush1.msra.mxu0 0.0
        %1850 = vmatprep.subr.mxu0 0.0
        %1851 = vmatpush1.msra.mxu0 0.0
        %1852 = vmatprep.subr.mxu0 0.0
        %1853 = vmatpush1.msra.mxu0 0.0
        %1854 = vmatprep.subr.mxu0 0.0
        %1855 = vmatpush1.msra.mxu0 0.0
        %1856 = vmatprep.subr.mxu0 0.0
        %1857 = vmatpush1.msra.mxu0 0.0
        %1858 = vmatprep.subr.mxu0 0.0
        %1859 = vmatpush1.msra.mxu0 0.0
        %1860 = vmatprep.subr.mxu0 0.0
        %1861 = vmatpush1.msra.mxu0 0.0
        %1862 = vmatprep.subr.mxu0 0.0
        %1863 = vmatpush1.msra.mxu0 0.0
        %1864 = vmatprep.subr.mxu0 0.0
        %1865 = vmatpush1.msra.mxu0 0.0
        %1866 = vmatprep.subr.mxu0 0.0
        %1867 = vmatpush1.msra.mxu0 0.0
        %1868 = vmatprep.subr.mxu0 0.0
        %1869 = vmatpush1.msra.mxu0 0.0
        %1870 = vmatprep.subr.mxu0 0.0
        %1871 = vmatpush1.msra.mxu0 0.0
        %1872 = vmatprep.subr.mxu0 0.0
        %1873 = vmatpush1.msra.mxu0 0.0
        %1874 = vmatprep.subr.mxu0 0.0
        %1875 = vmatpush1.msra.mxu0 0.0
        %1876 = vmatprep.subr.mxu0 0.0
        %1877 = vmatpush1.msra.mxu0 0.0
        %1878 = vmatprep.subr.mxu0 0.0
        %1879 = vmatpush1.msra.mxu0 0.0
        %1880 = vmatprep.subr.mxu0 0.0
        %1881 = vmatpush1.msra.mxu0 0.0
        %1882 = vmatprep.subr.mxu0 0.0
        %1883 = vmatpush1.msra.mxu0 0.0
        %1884 = vmatprep.mubr.f32.mxu0 0.0
        %1885 = vmatmul.mubr.f32.gmra.mrb[0].mxu0 %v1770
        %v1886 = vpop.f32.mrb[0].mxu0
        %v1887 = vadd.f32 0.0, %v1886
        %v1888 = vpop.f32.mrb[0].mxu0
        %1889 = vmatprep.mubr.f32.mxu0 0.0
        %1890 = vmatmul.mubr.f32.gmra.mrb[0].mxu0 %v1773
        %v1891 = vpop.f32.mrb[0].mxu0
        %v1892 = vadd.f32 0.0, %v1891
        %v1893 = vpop.f32.mrb[0].mxu0
        %1894 = vmatprep.mubr.f32.mxu0 0.0
        %1895 = vmatmul.mubr.f32.gmra.mrb[0].mxu0 %v1776
        %v1896 = vpop.f32.mrb[0].mxu0
        %v1897 = vadd.f32 0.0, %v1896
        %v1898 = vpop.f32.mrb[0].mxu0
        %1899 = vmatprep.mubr.f32.mxu0 0.0
        %1900 = vmatmul.mubr.f32.gmra.mrb[0].mxu0 %v1779
        %v1901 = vpop.f32.mrb[0].mxu0
        %v1902 = vadd.f32 0.0, %v1901
        %v1903 = vpop.f32.mrb[0].mxu0
        %1904 = vmatprep.mubr.f32.mxu0 0.0
        %1905 = vmatmul.mubr.f32.gmra.mrb[0].mxu0 %v1782
        %v1906 = vpop.f32.mrb[0].mxu0
        %v1907 = vadd.f32 0.0, %v1906
        %v1908 = vpop.f32.mrb[0].mxu0
        %1909 = vmatprep.mubr.f32.mxu0 0.0
        %1910 = vmatmul.mubr.f32.gmra.mrb[0].mxu0 %v1785
        %v1911 = vpop.f32.mrb[0].mxu0
        %v1912 = vadd.f32 0.0, %v1911
        %v1913 = vpop.f32.mrb[0].mxu0
        %1914 = vmatprep.mubr.f32.mxu0 0.0
        %1915 = vmatmul.mubr.f32.gmra.mrb[0].mxu0 %v1788
        %v1916 = vpop.f32.mrb[0].mxu0
        %v1917 = vadd.f32 0.0, %v1916
        %v1918 = vpop.f32.mrb[0].mxu0
        %1919 = vmatprep.mubr.f32.mxu0 0.0
        %1920 = vmatmul.mubr.f32.gmra.mrb[0].mxu0 %v1791
        %v1921 = vpop.f32.mrb[0].mxu0
        %v1922 = vadd.f32 0.0, %v1921
        %v1923 = vpop.f32.mrb[0].mxu0
        %1924 = vmatprep.mubr.f32.mxu0 0.0
        %1925 = vmatmul.mubr.f32.gmra.mrb[0].mxu0 %v1794
        %v1926 = vpop.f32.mrb[0].mxu0
        %v1927 = vadd.f32 0.0, %v1926
        %v1928 = vpop.f32.mrb[0].mxu0
        %1929 = vmatprep.mubr.f32.mxu0 0.0
        %1930 = vmatmul.mubr.f32.gmra.mrb[0].mxu0 %v1797
        %v1931 = vpop.f32.mrb[0].mxu0
        %v1932 = vadd.f32 0.0, %v1931
        %v1933 = vpop.f32.mrb[0].mxu0
        %1934 = vmatprep.mubr.f32.mxu0 0.0
        %1935 = vmatmul.mubr.f32.gmra.mrb[0].mxu0 %v1800
        %v1936 = vpop.f32.mrb[0].mxu0
        %v1937 = vadd.f32 0.0, %v1936
        %v1938 = vpop.f32.mrb[0].mxu0
        %1939 = vmatprep.mubr.f32.mxu0 0.0
        %1940 = vmatmul.mubr.f32.gmra.mrb[0].mxu0 %v1803
        %v1941 = vpop.f32.mrb[0].mxu0
        %v1942 = vadd.f32 0.0, %v1941
        %v1943 = vpop.f32.mrb[0].mxu0
        %1944 = vmatprep.mubr.f32.mxu0 0.0
        %1945 = vmatmul.mubr.f32.gmra.mrb[0].mxu0 %v1806
        %v1946 = vpop.f32.mrb[0].mxu0
        %v1947 = vadd.f32 0.0, %v1946
        %v1948 = vpop.f32.mrb[0].mxu0
        %1949 = vmatprep.mubr.f32.mxu0 0.0
        %1950 = vmatmul.mubr.f32.gmra.mrb[0].mxu0 %v1809
        %v1951 = vpop.f32.mrb[0].mxu0
        %v1952 = vadd.f32 0.0, %v1951
        %v1953 = vpop.f32.mrb[0].mxu0
        %1954 = vmatprep.mubr.f32.mxu0 0.0
        %1955 = vmatmul.mubr.f32.gmra.mrb[0].mxu0 %v1812
        %v1956 = vpop.f32.mrb[0].mxu0
        %v1957 = vadd.f32 0.0, %v1956
        %v1958 = vpop.f32.mrb[0].mxu0
        %1959 = vmatprep.mubr.f32.mxu0 0.0
        %1960 = vmatmul.mubr.f32.gmra.mrb[0].mxu0 %v1815
        %v1961 = vpop.f32.mrb[0].mxu0
        %v1962 = vadd.f32 0.0, %v1961
        %v1963 = vpop.f32.mrb[0].mxu0
        %1964 = vdwg.mxu0
        %v1965 = vadd.f32 %v1751, %v1887
        %v1966 = vadd.f32 %v1752, %v1892
        %v1967 = vadd.f32 %v1753, %v1897
        %v1968 = vadd.f32 %v1754, %v1902
        %v1969 = vadd.f32 %v1755, %v1907
        %v1970 = vadd.f32 %v1756, %v1912
        %v1971 = vadd.f32 %v1757, %v1917
        %v1972 = vadd.f32 %v1758, %v1922
        %v1973 = vadd.f32 %v1759, %v1927
        %v1974 = vadd.f32 %v1760, %v1932
        %v1975 = vadd.f32 %v1761, %v1937
        %v1976 = vadd.f32 %v1762, %v1942
        %v1977 = vadd.f32 %v1763, %v1947
        %v1978 = vadd.f32 %v1764, %v1952
        %v1979 = vadd.f32 %v1765, %v1957
        %v1980 = vadd.f32 %v1766, %v1962
        %v1989 = vrot.slane %v376, 1
        %v1990 = vrot.slane %v377, 1
        %v1991 = vsel %vm425, %v1989, %v1990
        %v1992 = vrot.slane %v378, 1
        %v1993 = vsel %vm425, %v1990, %v1992
        %v1994 = vrot.slane %v379, 1
        %v1995 = vrot.slane %v380, 1
        %v1996 = vsel %vm425, %v1994, %v1995
        %v1997 = vrot.slane %v381, 1
        %v1998 = vsel %vm425, %v1995, %v1997
        %v1999 = vrot.slane %v382, 1
        %v2000 = vrot.slane %v383, 1
        %v2001 = vsel %vm425, %v1999, %v2000
        %v2002 = vrot.slane %v384, 1
        %v2003 = vsel %vm425, %v2000, %v2002
        %v2004 = vrot.slane %v385, 1
        %v2005 = vrot.slane %v386, 1
        %v2006 = vsel %vm425, %v2004, %v2005
        %v2007 = vrot.slane %v387, 1
        %v2008 = vsel %vm425, %v2005, %v2007
        %v2009 = vrot.slane %v388, 1
        %v2010 = vrot.slane %v389, 1
        %v2011 = vsel %vm425, %v2009, %v2010
        %v2012 = vrot.slane %v390, 1
        %v2013 = vsel %vm425, %v2010, %v2012
        %v2014 = vrot.slane %v391, 1
        %v2015 = vrot.slane %v392, 1
        %v2016 = vsel %vm425, %v2014, %v2015
        %v2017 = vrot.slane %v393, 1
        %v2018 = vsel %vm425, %v2015, %v2017
        %v2019 = vrot.slane %v394, 1
        %v2020 = vrot.slane %v395, 1
        %v2021 = vsel %vm425, %v2019, %v2020
        %v2022 = vrot.slane %v396, 1
        %v2023 = vsel %vm425, %v2020, %v2022
        %v2024 = vrot.slane %v397, 1
        %v2025 = vrot.slane %v398, 1
        %v2026 = vsel %vm425, %v2024, %v2025
        %v2027 = vrot.slane %v399, 1
        %v2028 = vsel %vm425, %v2025, %v2027
        %s2029 = scalar_lea.vmem %s3, 28
        %v2030 = vld [vmem:[%s2029] sm:$0xf]
        %v2031 = vsel %vm468, %v1991, 0
        %v2033 = vsel %vm468, %v1993, 0
        %v2035 = vsel %vm468, %v1996, 0
        %v2037 = vsel %vm468, %v1998, 0
        %v2039 = vsel %vm468, %v2001, 0
        %v2041 = vsel %vm468, %v2003, 0
        %v2043 = vsel %vm468, %v2006, 0
        %v2045 = vsel %vm468, %v2008, 0
        %v2047 = vsel %vm468, %v2011, 0
        %v2049 = vsel %vm468, %v2013, 0
        %v2051 = vsel %vm468, %v2016, 0
        %v2053 = vsel %vm468, %v2018, 0
        %v2055 = vsel %vm468, %v2021, 0
        %v2057 = vsel %vm468, %v2023, 0
        %v2059 = vsel %vm468, %v2026, 0
        %v2061 = vsel %vm468, %v2028, 0
        %v2064 = vsel %vm501, %v2030, 0
        %2066 = vmatprep.subr.mxu0 0.0
        %2067 = vmatpush1.msra.mxu0 %v2064
        %2068 = vmatprep.subr.mxu0 0.0
        %2069 = vmatpush1.msra.mxu0 0.0
        %2070 = vmatprep.subr.mxu0 0.0
        %2071 = vmatpush1.msra.mxu0 0.0
        %2072 = vmatprep.subr.mxu0 0.0
        %2073 = vmatpush1.msra.mxu0 0.0
        %2074 = vmatprep.subr.mxu0 0.0
        %2075 = vmatpush1.msra.mxu0 0.0
        %2076 = vmatprep.subr.mxu0 0.0
        %2077 = vmatpush1.msra.mxu0 0.0
        %2078 = vmatprep.subr.mxu0 0.0
        %2079 = vmatpush1.msra.mxu0 0.0
        %2080 = vmatprep.subr.mxu0 0.0
        %2081 = vmatpush1.msra.mxu0 0.0
        %2082 = vmatprep.subr.mxu0 0.0
        %2083 = vmatpush1.msra.mxu0 0.0
        %2084 = vmatprep.subr.mxu0 0.0
        %2085 = vmatpush1.msra.mxu0 0.0
        %2086 = vmatprep.subr.mxu0 0.0
        %2087 = vmatpush1.msra.mxu0 0.0
        %2088 = vmatprep.subr.mxu0 0.0
        %2089 = vmatpush1.msra.mxu0 0.0
        %2090 = vmatprep.subr.mxu0 0.0
        %2091 = vmatpush1.msra.mxu0 0.0
        %2092 = vmatprep.subr.mxu0 0.0
        %2093 = vmatpush1.msra.mxu0 0.0
        %2094 = vmatprep.subr.mxu0 0.0
        %2095 = vmatpush1.msra.mxu0 0.0
        %2096 = vmatprep.subr.mxu0 0.0
        %2097 = vmatpush1.msra.mxu0 0.0
        %2098 = vmatprep.subr.mxu0 0.0
        %2099 = vmatpush1.msra.mxu0 0.0
        %2100 = vmatprep.subr.mxu0 0.0
        %2101 = vmatpush1.msra.mxu0 0.0
        %2102 = vmatprep.subr.mxu0 0.0
        %2103 = vmatpush1.msra.mxu0 0.0
        %2104 = vmatprep.subr.mxu0 0.0
        %2105 = vmatpush1.msra.mxu0 0.0
        %2106 = vmatprep.subr.mxu0 0.0
        %2107 = vmatpush1.msra.mxu0 0.0
        %2108 = vmatprep.subr.mxu0 0.0
        %2109 = vmatpush1.msra.mxu0 0.0
        %2110 = vmatprep.subr.mxu0 0.0
        %2111 = vmatpush1.msra.mxu0 0.0
        %2112 = vmatprep.subr.mxu0 0.0
        %2113 = vmatpush1.msra.mxu0 0.0
        %2114 = vmatprep.subr.mxu0 0.0
        %2115 = vmatpush1.msra.mxu0 0.0
        %2116 = vmatprep.subr.mxu0 0.0
        %2117 = vmatpush1.msra.mxu0 0.0
        %2118 = vmatprep.subr.mxu0 0.0
        %2119 = vmatpush1.msra.mxu0 0.0
        %2120 = vmatprep.subr.mxu0 0.0
        %2121 = vmatpush1.msra.mxu0 0.0
        %2122 = vmatprep.subr.mxu0 0.0
        %2123 = vmatpush1.msra.mxu0 0.0
        %2124 = vmatprep.subr.mxu0 0.0
        %2125 = vmatpush1.msra.mxu0 0.0
        %2126 = vmatprep.subr.mxu0 0.0
        %2127 = vmatpush1.msra.mxu0 0.0
        %2128 = vmatprep.subr.mxu0 0.0
        %2129 = vmatpush1.msra.mxu0 0.0
        %2130 = vmatprep.mubr.f32.mxu0 0.0
        %2131 = vmatmul.mubr.f32.gmra.mrb[0].mxu0 %v2031
        %v2132 = vpop.f32.mrb[0].mxu0
        %v2133 = vadd.f32 0.0, %v2132
        %v2134 = vpop.f32.mrb[0].mxu0
        %2135 = vmatprep.mubr.f32.mxu0 0.0
        %2136 = vmatmul.mubr.f32.gmra.mrb[0].mxu0 %v2033
        %v2137 = vpop.f32.mrb[0].mxu0
        %v2138 = vadd.f32 0.0, %v2137
        %v2139 = vpop.f32.mrb[0].mxu0
        %2140 = vmatprep.mubr.f32.mxu0 0.0
        %2141 = vmatmul.mubr.f32.gmra.mrb[0].mxu0 %v2035
        %v2142 = vpop.f32.mrb[0].mxu0
        %v2143 = vadd.f32 0.0, %v2142
        %v2144 = vpop.f32.mrb[0].mxu0
        %2145 = vmatprep.mubr.f32.mxu0 0.0
        %2146 = vmatmul.mubr.f32.gmra.mrb[0].mxu0 %v2037
        %v2147 = vpop.f32.mrb[0].mxu0
        %v2148 = vadd.f32 0.0, %v2147
        %v2149 = vpop.f32.mrb[0].mxu0
        %2150 = vmatprep.mubr.f32.mxu0 0.0
        %2151 = vmatmul.mubr.f32.gmra.mrb[0].mxu0 %v2039
        %v2152 = vpop.f32.mrb[0].mxu0
        %v2153 = vadd.f32 0.0, %v2152
        %v2154 = vpop.f32.mrb[0].mxu0
        %2155 = vmatprep.mubr.f32.mxu0 0.0
        %2156 = vmatmul.mubr.f32.gmra.mrb[0].mxu0 %v2041
        %v2157 = vpop.f32.mrb[0].mxu0
        %v2158 = vadd.f32 0.0, %v2157
        %v2159 = vpop.f32.mrb[0].mxu0
        %2160 = vmatprep.mubr.f32.mxu0 0.0
        %2161 = vmatmul.mubr.f32.gmra.mrb[0].mxu0 %v2043
        %v2162 = vpop.f32.mrb[0].mxu0
        %v2163 = vadd.f32 0.0, %v2162
        %v2164 = vpop.f32.mrb[0].mxu0
        %2165 = vmatprep.mubr.f32.mxu0 0.0
        %2166 = vmatmul.mubr.f32.gmra.mrb[0].mxu0 %v2045
        %v2167 = vpop.f32.mrb[0].mxu0
        %v2168 = vadd.f32 0.0, %v2167
        %v2169 = vpop.f32.mrb[0].mxu0
        %2170 = vmatprep.mubr.f32.mxu0 0.0
        %2171 = vmatmul.mubr.f32.gmra.mrb[0].mxu0 %v2047
        %v2172 = vpop.f32.mrb[0].mxu0
        %v2173 = vadd.f32 0.0, %v2172
        %v2174 = vpop.f32.mrb[0].mxu0
        %2175 = vmatprep.mubr.f32.mxu0 0.0
        %2176 = vmatmul.mubr.f32.gmra.mrb[0].mxu0 %v2049
        %v2177 = vpop.f32.mrb[0].mxu0
        %v2178 = vadd.f32 0.0, %v2177
        %v2179 = vpop.f32.mrb[0].mxu0
        %2180 = vmatprep.mubr.f32.mxu0 0.0
        %2181 = vmatmul.mubr.f32.gmra.mrb[0].mxu0 %v2051
        %v2182 = vpop.f32.mrb[0].mxu0
        %v2183 = vadd.f32 0.0, %v2182
        %v2184 = vpop.f32.mrb[0].mxu0
        %2185 = vmatprep.mubr.f32.mxu0 0.0
        %2186 = vmatmul.mubr.f32.gmra.mrb[0].mxu0 %v2053
        %v2187 = vpop.f32.mrb[0].mxu0
        %v2188 = vadd.f32 0.0, %v2187
        %v2189 = vpop.f32.mrb[0].mxu0
        %2190 = vmatprep.mubr.f32.mxu0 0.0
        %2191 = vmatmul.mubr.f32.gmra.mrb[0].mxu0 %v2055
        %v2192 = vpop.f32.mrb[0].mxu0
        %v2193 = vadd.f32 0.0, %v2192
        %v2194 = vpop.f32.mrb[0].mxu0
        %2195 = vmatprep.mubr.f32.mxu0 0.0
        %2196 = vmatmul.mubr.f32.gmra.mrb[0].mxu0 %v2057
        %v2197 = vpop.f32.mrb[0].mxu0
        %v2198 = vadd.f32 0.0, %v2197
        %v2199 = vpop.f32.mrb[0].mxu0
        %2200 = vmatprep.mubr.f32.mxu0 0.0
        %2201 = vmatmul.mubr.f32.gmra.mrb[0].mxu0 %v2059
        %v2202 = vpop.f32.mrb[0].mxu0
        %v2203 = vadd.f32 0.0, %v2202
        %v2204 = vpop.f32.mrb[0].mxu0
        %2205 = vmatprep.mubr.f32.mxu0 0.0
        %2206 = vmatmul.mubr.f32.gmra.mrb[0].mxu0 %v2061
        %v2207 = vpop.f32.mrb[0].mxu0
        %v2208 = vadd.f32 0.0, %v2207
        %v2209 = vpop.f32.mrb[0].mxu0
        %2210 = vdwg.mxu0
        %v2211 = vadd.f32 %v1965, %v2133
        %v2212 = vadd.f32 %v1966, %v2138
        %v2213 = vadd.f32 %v1967, %v2143
        %v2214 = vadd.f32 %v1968, %v2148
        %v2215 = vadd.f32 %v1969, %v2153
        %v2216 = vadd.f32 %v1970, %v2158
        %v2217 = vadd.f32 %v1971, %v2163
        %v2218 = vadd.f32 %v1972, %v2168
        %v2219 = vadd.f32 %v1973, %v2173
        %v2220 = vadd.f32 %v1974, %v2178
        %v2221 = vadd.f32 %v1975, %v2183
        %v2222 = vadd.f32 %v1976, %v2188
        %v2223 = vadd.f32 %v1977, %v2193
        %v2224 = vadd.f32 %v1978, %v2198
        %v2225 = vadd.f32 %v1979, %v2203
        %v2226 = vadd.f32 %v1980, %v2208
        %v2227 = vrot.slane %v376, 2
        %v2228 = vrot.slane %v377, 2
        %v2229 = vsel %vm830, %v2227, %v2228
        %v2230 = vrot.slane %v378, 2
        %v2231 = vsel %vm830, %v2228, %v2230
        %v2232 = vrot.slane %v379, 2
        %v2233 = vrot.slane %v380, 2
        %v2234 = vsel %vm830, %v2232, %v2233
        %v2235 = vrot.slane %v381, 2
        %v2236 = vsel %vm830, %v2233, %v2235
        %v2237 = vrot.slane %v382, 2
        %v2238 = vrot.slane %v383, 2
        %v2239 = vsel %vm830, %v2237, %v2238
        %v2240 = vrot.slane %v384, 2
        %v2241 = vsel %vm830, %v2238, %v2240
        %v2242 = vrot.slane %v385, 2
        %v2243 = vrot.slane %v386, 2
        %v2244 = vsel %vm830, %v2242, %v2243
        %v2245 = vrot.slane %v387, 2
        %v2246 = vsel %vm830, %v2243, %v2245
        %v2247 = vrot.slane %v388, 2
        %v2248 = vrot.slane %v389, 2
        %v2249 = vsel %vm830, %v2247, %v2248
        %v2250 = vrot.slane %v390, 2
        %v2251 = vsel %vm830, %v2248, %v2250
        %v2252 = vrot.slane %v391, 2
        %v2253 = vrot.slane %v392, 2
        %v2254 = vsel %vm830, %v2252, %v2253
        %v2255 = vrot.slane %v393, 2
        %v2256 = vsel %vm830, %v2253, %v2255
        %v2257 = vrot.slane %v394, 2
        %v2258 = vrot.slane %v395, 2
        %v2259 = vsel %vm830, %v2257, %v2258
        %v2260 = vrot.slane %v396, 2
        %v2261 = vsel %vm830, %v2258, %v2260
        %v2262 = vrot.slane %v397, 2
        %v2263 = vrot.slane %v398, 2
        %v2264 = vsel %vm830, %v2262, %v2263
        %v2265 = vrot.slane %v399, 2
        %v2266 = vsel %vm830, %v2263, %v2265
        %s2267 = scalar_lea.vmem %s3, 32
        %v2268 = vld [vmem:[%s2267] sm:$0xf]
        %v2269 = vsel %vm468, %v2229, 0
        %v2271 = vsel %vm468, %v2231, 0
        %v2273 = vsel %vm468, %v2234, 0
        %v2275 = vsel %vm468, %v2236, 0
        %v2277 = vsel %vm468, %v2239, 0
        %v2279 = vsel %vm468, %v2241, 0
        %v2281 = vsel %vm468, %v2244, 0
        %v2283 = vsel %vm468, %v2246, 0
        %v2285 = vsel %vm468, %v2249, 0
        %v2287 = vsel %vm468, %v2251, 0
        %v2289 = vsel %vm468, %v2254, 0
        %v2291 = vsel %vm468, %v2256, 0
        %v2293 = vsel %vm468, %v2259, 0
        %v2295 = vsel %vm468, %v2261, 0
        %v2297 = vsel %vm468, %v2264, 0
        %v2299 = vsel %vm468, %v2266, 0
        %v2302 = vsel %vm501, %v2268, 0
        %2304 = vmatprep.subr.mxu0 0.0
        %2305 = vmatpush1.msra.mxu0 %v2302
        %2306 = vmatprep.subr.mxu0 0.0
        %2307 = vmatpush1.msra.mxu0 0.0
        %2308 = vmatprep.subr.mxu0 0.0
        %2309 = vmatpush1.msra.mxu0 0.0
        %2310 = vmatprep.subr.mxu0 0.0
        %2311 = vmatpush1.msra.mxu0 0.0
        %2312 = vmatprep.subr.mxu0 0.0
        %2313 = vmatpush1.msra.mxu0 0.0
        %2314 = vmatprep.subr.mxu0 0.0
        %2315 = vmatpush1.msra.mxu0 0.0
        %2316 = vmatprep.subr.mxu0 0.0
        %2317 = vmatpush1.msra.mxu0 0.0
        %2318 = vmatprep.subr.mxu0 0.0
        %2319 = vmatpush1.msra.mxu0 0.0
        %2320 = vmatprep.subr.mxu0 0.0
        %2321 = vmatpush1.msra.mxu0 0.0
        %2322 = vmatprep.subr.mxu0 0.0
        %2323 = vmatpush1.msra.mxu0 0.0
        %2324 = vmatprep.subr.mxu0 0.0
        %2325 = vmatpush1.msra.mxu0 0.0
        %2326 = vmatprep.subr.mxu0 0.0
        %2327 = vmatpush1.msra.mxu0 0.0
        %2328 = vmatprep.subr.mxu0 0.0
        %2329 = vmatpush1.msra.mxu0 0.0
        %2330 = vmatprep.subr.mxu0 0.0
        %2331 = vmatpush1.msra.mxu0 0.0
        %2332 = vmatprep.subr.mxu0 0.0
        %2333 = vmatpush1.msra.mxu0 0.0
        %2334 = vmatprep.subr.mxu0 0.0
        %2335 = vmatpush1.msra.mxu0 0.0
        %2336 = vmatprep.subr.mxu0 0.0
        %2337 = vmatpush1.msra.mxu0 0.0
        %2338 = vmatprep.subr.mxu0 0.0
        %2339 = vmatpush1.msra.mxu0 0.0
        %2340 = vmatprep.subr.mxu0 0.0
        %2341 = vmatpush1.msra.mxu0 0.0
        %2342 = vmatprep.subr.mxu0 0.0
        %2343 = vmatpush1.msra.mxu0 0.0
        %2344 = vmatprep.subr.mxu0 0.0
        %2345 = vmatpush1.msra.mxu0 0.0
        %2346 = vmatprep.subr.mxu0 0.0
        %2347 = vmatpush1.msra.mxu0 0.0
        %2348 = vmatprep.subr.mxu0 0.0
        %2349 = vmatpush1.msra.mxu0 0.0
        %2350 = vmatprep.subr.mxu0 0.0
        %2351 = vmatpush1.msra.mxu0 0.0
        %2352 = vmatprep.subr.mxu0 0.0
        %2353 = vmatpush1.msra.mxu0 0.0
        %2354 = vmatprep.subr.mxu0 0.0
        %2355 = vmatpush1.msra.mxu0 0.0
        %2356 = vmatprep.subr.mxu0 0.0
        %2357 = vmatpush1.msra.mxu0 0.0
        %2358 = vmatprep.subr.mxu0 0.0
        %2359 = vmatpush1.msra.mxu0 0.0
        %2360 = vmatprep.subr.mxu0 0.0
        %2361 = vmatpush1.msra.mxu0 0.0
        %2362 = vmatprep.subr.mxu0 0.0
        %2363 = vmatpush1.msra.mxu0 0.0
        %2364 = vmatprep.subr.mxu0 0.0
        %2365 = vmatpush1.msra.mxu0 0.0
        %2366 = vmatprep.subr.mxu0 0.0
        %2367 = vmatpush1.msra.mxu0 0.0
        %2368 = vmatprep.mubr.f32.mxu0 0.0
        %2369 = vmatmul.mubr.f32.gmra.mrb[0].mxu0 %v2269
        %v2370 = vpop.f32.mrb[0].mxu0
        %v2371 = vadd.f32 0.0, %v2370
        %v2372 = vpop.f32.mrb[0].mxu0
        %2373 = vmatprep.mubr.f32.mxu0 0.0
        %2374 = vmatmul.mubr.f32.gmra.mrb[0].mxu0 %v2271
        %v2375 = vpop.f32.mrb[0].mxu0
        %v2376 = vadd.f32 0.0, %v2375
        %v2377 = vpop.f32.mrb[0].mxu0
        %2378 = vmatprep.mubr.f32.mxu0 0.0
        %2379 = vmatmul.mubr.f32.gmra.mrb[0].mxu0 %v2273
        %v2380 = vpop.f32.mrb[0].mxu0
        %v2381 = vadd.f32 0.0, %v2380
        %v2382 = vpop.f32.mrb[0].mxu0
        %2383 = vmatprep.mubr.f32.mxu0 0.0
        %2384 = vmatmul.mubr.f32.gmra.mrb[0].mxu0 %v2275
        %v2385 = vpop.f32.mrb[0].mxu0
        %v2386 = vadd.f32 0.0, %v2385
        %v2387 = vpop.f32.mrb[0].mxu0
        %2388 = vmatprep.mubr.f32.mxu0 0.0
        %2389 = vmatmul.mubr.f32.gmra.mrb[0].mxu0 %v2277
        %v2390 = vpop.f32.mrb[0].mxu0
        %v2391 = vadd.f32 0.0, %v2390
        %v2392 = vpop.f32.mrb[0].mxu0
        %2393 = vmatprep.mubr.f32.mxu0 0.0
        %2394 = vmatmul.mubr.f32.gmra.mrb[0].mxu0 %v2279
        %v2395 = vpop.f32.mrb[0].mxu0
        %v2396 = vadd.f32 0.0, %v2395
        %v2397 = vpop.f32.mrb[0].mxu0
        %2398 = vmatprep.mubr.f32.mxu0 0.0
        %2399 = vmatmul.mubr.f32.gmra.mrb[0].mxu0 %v2281
        %v2400 = vpop.f32.mrb[0].mxu0
        %v2401 = vadd.f32 0.0, %v2400
        %v2402 = vpop.f32.mrb[0].mxu0
        %2403 = vmatprep.mubr.f32.mxu0 0.0
        %2404 = vmatmul.mubr.f32.gmra.mrb[0].mxu0 %v2283
        %v2405 = vpop.f32.mrb[0].mxu0
        %v2406 = vadd.f32 0.0, %v2405
        %v2407 = vpop.f32.mrb[0].mxu0
        %2408 = vmatprep.mubr.f32.mxu0 0.0
        %2409 = vmatmul.mubr.f32.gmra.mrb[0].mxu0 %v2285
        %v2410 = vpop.f32.mrb[0].mxu0
        %v2411 = vadd.f32 0.0, %v2410
        %v2412 = vpop.f32.mrb[0].mxu0
        %2413 = vmatprep.mubr.f32.mxu0 0.0
        %2414 = vmatmul.mubr.f32.gmra.mrb[0].mxu0 %v2287
        %v2415 = vpop.f32.mrb[0].mxu0
        %v2416 = vadd.f32 0.0, %v2415
        %v2417 = vpop.f32.mrb[0].mxu0
        %2418 = vmatprep.mubr.f32.mxu0 0.0
        %2419 = vmatmul.mubr.f32.gmra.mrb[0].mxu0 %v2289
        %v2420 = vpop.f32.mrb[0].mxu0
        %v2421 = vadd.f32 0.0, %v2420
        %v2422 = vpop.f32.mrb[0].mxu0
        %2423 = vmatprep.mubr.f32.mxu0 0.0
        %2424 = vmatmul.mubr.f32.gmra.mrb[0].mxu0 %v2291
        %v2425 = vpop.f32.mrb[0].mxu0
        %v2426 = vadd.f32 0.0, %v2425
        %v2427 = vpop.f32.mrb[0].mxu0
        %2428 = vmatprep.mubr.f32.mxu0 0.0
        %2429 = vmatmul.mubr.f32.gmra.mrb[0].mxu0 %v2293
        %v2430 = vpop.f32.mrb[0].mxu0
        %v2431 = vadd.f32 0.0, %v2430
        %v2432 = vpop.f32.mrb[0].mxu0
        %2433 = vmatprep.mubr.f32.mxu0 0.0
        %2434 = vmatmul.mubr.f32.gmra.mrb[0].mxu0 %v2295
        %v2435 = vpop.f32.mrb[0].mxu0
        %v2436 = vadd.f32 0.0, %v2435
        %v2437 = vpop.f32.mrb[0].mxu0
        %2438 = vmatprep.mubr.f32.mxu0 0.0
        %2439 = vmatmul.mubr.f32.gmra.mrb[0].mxu0 %v2297
        %v2440 = vpop.f32.mrb[0].mxu0
        %v2441 = vadd.f32 0.0, %v2440
        %v2442 = vpop.f32.mrb[0].mxu0
        %2443 = vmatprep.mubr.f32.mxu0 0.0
        %2444 = vmatmul.mubr.f32.gmra.mrb[0].mxu0 %v2299
        %v2445 = vpop.f32.mrb[0].mxu0
        %v2446 = vadd.f32 0.0, %v2445
        %v2447 = vpop.f32.mrb[0].mxu0
        %2448 = vdwg.mxu0
        %v2449 = vadd.f32 %v2211, %v2371
        %v2450 = vadd.f32 %v2212, %v2376
        %v2451 = vadd.f32 %v2213, %v2381
        %v2452 = vadd.f32 %v2214, %v2386
        %v2453 = vadd.f32 %v2215, %v2391
        %v2454 = vadd.f32 %v2216, %v2396
        %v2455 = vadd.f32 %v2217, %v2401
        %v2456 = vadd.f32 %v2218, %v2406
        %v2457 = vadd.f32 %v2219, %v2411
        %v2458 = vadd.f32 %v2220, %v2416
        %v2459 = vadd.f32 %v2221, %v2421
        %v2460 = vadd.f32 %v2222, %v2426
        %v2461 = vadd.f32 %v2223, %v2431
        %v2462 = vadd.f32 %v2224, %v2436
        %v2463 = vadd.f32 %v2225, %v2441
        %v2464 = vadd.f32 %v2226, %v2446
        %v2465 = vld [vmem:[#allocation2] sm:$0x1]
        %vm2466 = vcmask 523264
        %v2467 = vsel %vm2466, %v2449, 0.0
        %v2468 = vsel %vm2466, %v2450, 0.0
        %v2469 = vadd.f32 %v2467, %v2468
        %v2470 = vsel %vm2466, %v2451, 0.0
        %v2471 = vadd.f32 %v2469, %v2470
        %v2472 = vsel %vm2466, %v2452, 0.0
        %v2473 = vadd.f32 %v2471, %v2472
        %v2474 = vsel %vm2466, %v2453, 0.0
        %v2475 = vadd.f32 %v2473, %v2474
        %v2476 = vsel %vm2466, %v2454, 0.0
        %v2477 = vadd.f32 %v2475, %v2476
        %v2478 = vsel %vm2466, %v2455, 0.0
        %v2479 = vadd.f32 %v2477, %v2478
        %v2480 = vsel %vm2466, %v2456, 0.0
        %v2481 = vadd.f32 %v2479, %v2480
        %v2482 = vsel %vm2466, %v2457, 0.0
        %v2483 = vadd.f32 %v2481, %v2482
        %v2484 = vsel %vm2466, %v2458, 0.0
        %v2485 = vadd.f32 %v2483, %v2484
        %v2486 = vsel %vm2466, %v2459, 0.0
        %v2487 = vadd.f32 %v2485, %v2486
        %v2488 = vsel %vm2466, %v2460, 0.0
        %v2489 = vadd.f32 %v2487, %v2488
        %v2490 = vsel %vm2466, %v2461, 0.0
        %v2491 = vadd.f32 %v2489, %v2490
        %v2492 = vsel %vm2466, %v2462, 0.0
        %v2493 = vadd.f32 %v2491, %v2492
        %v2494 = vsel %vm2466, %v2463, 0.0
        %v2495 = vadd.f32 %v2493, %v2494
        %v2496 = vsel %vm2466, %v2464, 0.0
        %v2497 = vadd.f32 %v2495, %v2496
        %v2498 = vrot.slane %v2497, 4
        %v2499 = vadd.f32 %v2497, %v2498
        %v2500 = vrot.slane %v2499, 2
        %v2501 = vadd.f32 %v2499, %v2500
        %v2502 = vrot.slane %v2501, 1
        %v2503 = vadd.f32 %v2501, %v2502
        %v2504 = vadd.f32 %v2465, %v2503
        %vm2505 = vcmask 516096
        %2506 = vst.msk [vmem:[#allocation2] sm:$0x1] %vm2505, %v2504
        %v2507 = vld [vmem:[#allocation4] sm:$0x1]
        %v2508 = vmul.f32 %v2449, %v2449
        %v2509 = vmul.f32 %v2450, %v2450
        %v2510 = vmul.f32 %v2451, %v2451
        %v2511 = vmul.f32 %v2452, %v2452
        %v2512 = vmul.f32 %v2453, %v2453
        %v2513 = vmul.f32 %v2454, %v2454
        %v2514 = vmul.f32 %v2455, %v2455
        %v2515 = vmul.f32 %v2456, %v2456
        %v2516 = vmul.f32 %v2457, %v2457
        %v2517 = vmul.f32 %v2458, %v2458
        %v2518 = vmul.f32 %v2459, %v2459
        %v2519 = vmul.f32 %v2460, %v2460
        %v2520 = vmul.f32 %v2461, %v2461
        %v2521 = vmul.f32 %v2462, %v2462
        %v2522 = vmul.f32 %v2463, %v2463
        %v2523 = vmul.f32 %v2464, %v2464
        %v2524 = vsel %vm2466, %v2508, 0.0
        %v2525 = vsel %vm2466, %v2509, 0.0
        %v2526 = vadd.f32 %v2524, %v2525
        %v2527 = vsel %vm2466, %v2510, 0.0
        %v2528 = vadd.f32 %v2526, %v2527
        %v2529 = vsel %vm2466, %v2511, 0.0
        %v2530 = vadd.f32 %v2528, %v2529
        %v2531 = vsel %vm2466, %v2512, 0.0
        %v2532 = vadd.f32 %v2530, %v2531
        %v2533 = vsel %vm2466, %v2513, 0.0
        %v2534 = vadd.f32 %v2532, %v2533
        %v2535 = vsel %vm2466, %v2514, 0.0
        %v2536 = vadd.f32 %v2534, %v2535
        %v2537 = vsel %vm2466, %v2515, 0.0
        %v2538 = vadd.f32 %v2536, %v2537
        %v2539 = vsel %vm2466, %v2516, 0.0
        %v2540 = vadd.f32 %v2538, %v2539
        %v2541 = vsel %vm2466, %v2517, 0.0
        %v2542 = vadd.f32 %v2540, %v2541
        %v2543 = vsel %vm2466, %v2518, 0.0
        %v2544 = vadd.f32 %v2542, %v2543
        %v2545 = vsel %vm2466, %v2519, 0.0
        %v2546 = vadd.f32 %v2544, %v2545
        %v2547 = vsel %vm2466, %v2520, 0.0
        %v2548 = vadd.f32 %v2546, %v2547
        %v2549 = vsel %vm2466, %v2521, 0.0
        %v2550 = vadd.f32 %v2548, %v2549
        %v2551 = vsel %vm2466, %v2522, 0.0
        %v2552 = vadd.f32 %v2550, %v2551
        %v2553 = vsel %vm2466, %v2523, 0.0
        %v2554 = vadd.f32 %v2552, %v2553
        %v2555 = vrot.slane %v2554, 4
        %v2556 = vadd.f32 %v2554, %v2555
        %v2557 = vrot.slane %v2556, 2
        %v2558 = vadd.f32 %v2556, %v2557
        %v2559 = vrot.slane %v2558, 1
        %v2560 = vadd.f32 %v2558, %v2559
        %v2561 = vadd.f32 %v2507, %v2560
        %2562 = vst.msk [vmem:[#allocation4] sm:$0x1] %vm2505, %v2561
        // Predicated region
        $region41: #{tpu_custom_call.1} parent=35 // pred_check
          %p2563 = pneg %p149
        $region42: #{tpu_custom_call.1} parent=35 // pred_check_branch
          %2565 = sbr.rel (%p2563) target = $region44
        $region43: #{tpu_custom_call.1} parent=35 // pred_region
          %s2567 = ssub.s32 16, 16
          %2568 = vsyncadd [#allocation3], %s2567
          %s2570 = sshll.u32 [#allocation2], 4
          %s2571 = int_to_ptr.vmem [resolvable:$true] %s2570
          %2573 = dma.vmem_to_hbm [thread:$0]  %s2571, 16, %s4, [#allocation3]
        $region44: #{tpu_custom_call.1} parent=35 // pred_fallthru
          _
        // Predicated region
        $region45: #{tpu_custom_call.1} parent=35 // pred_check
          %p2574 = pneg %p170
        $region46: #{tpu_custom_call.1} parent=35 // pred_check_branch
          %2576 = sbr.rel (%p2574) target = $region48
        $region47: #{tpu_custom_call.1} parent=35 // pred_region
          %s2578 = ssub.s32 16, 16
          %2579 = vsyncadd [#allocation5], %s2578
          %s2581 = sshll.u32 [#allocation4], 4
          %s2582 = int_to_ptr.vmem [resolvable:$true] %s2581
          %2584 = dma.vmem_to_hbm [thread:$0]  %s2582, 16, %s5, [#allocation5]
        $region48: #{tpu_custom_call.1} parent=35 // pred_fallthru
          _
        // Predicated region
        $region49: #{tpu_custom_call.1} parent=35 // pred_check
          %p2585 = pneg %p149
        $region50: #{tpu_custom_call.1} parent=35 // pred_check_branch
          %2587 = sbr.rel (%p2585) target = $region52
        $region51: #{tpu_custom_call.1} parent=35 // pred_region
          %2588 = dma.done [#allocation3], 16
        $region52: #{tpu_custom_call.1} parent=35 // pred_fallthru
          _
        // Predicated region
        $region53: #{tpu_custom_call.1} parent=35 // pred_check
          %p2589 = pneg %p170
        $region54: #{tpu_custom_call.1} parent=35 // pred_check_branch
          %2591 = sbr.rel (%p2589) target = $region56
        $region55: #{tpu_custom_call.1} parent=35 // pred_region
          %2592 = dma.done [#allocation5], 16
        $region56: #{tpu_custom_call.1} parent=35 // pred_fallthru
          _
      $region36: #{tpu_custom_call.1} parent=5 // pred_fallthru
        _
      %p2593 = scmp.le.s32.totalorder 2, %s14
      // Predicated region
      $region57: #{tpu_custom_call.1} parent=5 // pred_check
        %p2594 = pneg %p2593
      $region58: #{tpu_custom_call.1} parent=5 // pred_check_branch
        %2596 = sbr.rel (%p2594) target = $region60
      $region59: #{tpu_custom_call.1} parent=5 // pred_region
        %s2597 = ssub.s32 %s14, 2
      $region60: #{tpu_custom_call.1} parent=5 // pred_fallthru
        _
    $region6: #{tpu_custom_call.1} parent=1 // loop_footer
      %s18 = sadd.s32 1, %s14
    $region7: #{tpu_custom_call.1} parent=1 // loop_footer_branch
      %13 = sbr.rel target = $region3
    $region8: #{tpu_custom_call.1} parent=1 // loop_exit
      _
    %2598 = vsyncpa [#allocation3], 1
    %s2599 = scalar_lea.sflag [#allocation3], 1
    %2600 = vsyncpa %s2599, 1
    %2601 = vsyncpa [#allocation5], 1

</llo_original>
